<compile_context>
chip_gen: v5e
topology: v5e:2x2
jax: 0.10.0
libtpu: 0.0.40
codegen_flags: <defaults>
</compile_context>

<pallas_src>
import jax
import jax.numpy as jnp
from jax.experimental import pallas as pl
from jax.experimental.pallas import tpu as pltpu


def cbow_kernel(x_ref, w1_ref, b1_ref, w2_ref, b2_ref, o_ref, h_ref):
    j = pl.program_id(0)

    # fc1 runs exactly once; h stays resident in VMEM scratch for all tiles.
    @pl.when(j == 0)
    def _():
        # Sum over context axis (VPU), cast to float (matches sum([*x]).float()).
        xs = jnp.sum(x_ref[...], axis=0).astype(jnp.float32)          # (B, V)
        h = jnp.dot(xs.astype(jnp.bfloat16), w1_ref[...],
                    preferred_element_type=jnp.float32) + b1_ref[...]  # (B, H)
        h_ref[...] = h

    # fc2 for this vocab tile: (B, H) @ (H, TN) + b2_tile  -> lane-dense store.
    o_ref[...] = (jnp.dot(h_ref[...].astype(jnp.bfloat16), w2_ref[...],
                          preferred_element_type=jnp.float32)
                  + b2_ref[...]).astype(o_ref.dtype)


def cbow_forward(x, w1, b1, w2, b2, *, tn=512):
    """x: (C, B, V) int counts; w1: (V, H); b1: (1, H); w2: (H, V); b2: (1, V)."""
    C, B, V = x.shape
    H = w1.shape[1]

    # Lane-dense fc2 tile width (multiple of 128); fall back to a single tile
    # if V isn't divisible.
    if V % tn != 0 or V < tn:
        tn = V
    num_tiles = V // tn

    # bf16 weights for halved DMA + bf16 MXU path; f32 accumulate in-kernel.
    w1 = w1.astype(jnp.bfloat16)
    w2 = w2.astype(jnp.bfloat16)
    b1 = b1.astype(jnp.float32)
    b2 = b2.astype(jnp.float32)

    return pl.pallas_call(
        cbow_kernel,
        out_shape=jax.ShapeDtypeStruct((B, V), jnp.float32),
        grid_spec=pltpu.PrefetchScalarGridSpec(
            num_scalar_prefetch=0,
            grid=(num_tiles,),
            in_specs=[
                # x, w1, b1 have constant block indices -> fetched once, stay
                # resident across the fc2 sweep.
                pl.BlockSpec((C, B, V), lambda j: (0, 0, 0)),
                pl.BlockSpec((V, H), lambda j: (0, 0)),
                pl.BlockSpec((1, H), lambda j: (0, 0)),
                # w2 / b2 stream one vocab tile per grid step (double-buffered).
                pl.BlockSpec((H, tn), lambda j: (0, j)),
                pl.BlockSpec((1, tn), lambda j: (0, j)),
            ],
            out_specs=pl.BlockSpec((B, tn), lambda j: (0, j)),
            scratch_shapes=[pltpu.VMEM((B, H), jnp.float32)],  # resident h
        ),
        compiler_params=pltpu.CompilerParams(
            # "arbitrary": the pl.when(j==0) h-init must run on the same core
            # as every later tile (scratch is per-core on multi-TC chips).
            dimension_semantics=("arbitrary",),
            vmem_limit_bytes=48 << 20,
        ),
    )(x, w1, b1, w2, b2)


if __name__ == "__main__":
    # Small shapes consistent with the module: CBOW over a bag-of-words context.
    C, B = 4, 8            # context window, batch
    V, H = 1024, 256       # input_size (vocab), hidden_size  -> 2 fc2 tiles of 512

    key = jax.random.PRNGKey(0)
    kx, kw1, kb1, kw2, kb2 = jax.random.split(key, 5)

    # Integer input (bag-of-words counts); kernel casts after the sum,
    # mirroring `sum([*x]).float()`.
    x = jax.random.randint(kx, (C, B, V), 0, 2, dtype=jnp.int32)

    # Deterministic parameter init (PyTorch Linear shapes, stored transposed).
    w1 = (jax.random.uniform(kw1, (V, H), jnp.float32) - 0.5) * (2.0 / jnp.sqrt(V))
    b1 = (jax.random.uniform(kb1, (1, H), jnp.float32) - 0.5) * (2.0 / jnp.sqrt(V))
    w2 = (jax.random.uniform(kw2, (H, V), jnp.float32) - 0.5) * (2.0 / jnp.sqrt(H))
    b2 = (jax.random.uniform(kb2, (1, V), jnp.float32) - 0.5) * (2.0 / jnp.sqrt(H))

    out = cbow_forward(x, w1, b1, w2, b2)
    out = jax.block_until_ready(out)

    # Pure-JAX reference with the same bf16 weight cast / f32 accumulation the
    # kernel uses, so tolerances stay tight.
    xs_ref = jnp.sum(x, axis=0).astype(jnp.float32)
    h_ref = jnp.dot(xs_ref.astype(jnp.bfloat16), w1.astype(jnp.bfloat16),
                    preferred_element_type=jnp.float32) + b1
    ref = jnp.dot(h_ref.astype(jnp.bfloat16), w2.astype(jnp.bfloat16),
                  preferred_element_type=jnp.float32) + b2

    assert out.shape == (B, V)
    assert jnp.allclose(out, ref, atol=1e-2, rtol=1e-2)

    print("KERNEL_OK")
</pallas_src>

<mosaic_0001>
module attributes {stable_mosaic.version = 11 : i64} {
  func.func @cbow_kernel(%arg0: i32, %arg1: memref<4x8x1024xi32, #tpu.memory_space<vmem>>, %arg2: memref<1024x256xbf16, #tpu.memory_space<vmem>>, %arg3: memref<1x256xf32, #tpu.memory_space<vmem>>, %arg4: memref<256x512xbf16, #tpu.memory_space<vmem>>, %arg5: memref<1x512xf32, #tpu.memory_space<vmem>>, %arg6: memref<8x512xf32, #tpu.memory_space<vmem>>, %arg7: memref<8x256xf32, #tpu.memory_space<vmem>>) attributes {dimension_semantics = [#tpu.dimension_semantics<arbitrary>], iteration_bounds = array<i64: 2>, scalar_prefetch = 0 : i64, scratch_operands = 1 : i64, tpu.core_type = #tpu.core_type<tc>, window_params = [{pipeline_mode = #tpu.pipeline_mode<synchronous>, transform_indices = @transform_0, window_bounds = array<i64: 4, 8, 1024>}, {pipeline_mode = #tpu.pipeline_mode<synchronous>, transform_indices = @transform_1, window_bounds = array<i64: 1024, 256>}, {pipeline_mode = #tpu.pipeline_mode<synchronous>, transform_indices = @transform_2, window_bounds = array<i64: 1, 256>}, {transform_indices = @transform_3, window_bounds = array<i64: 256, 512>}, {transform_indices = @transform_4, window_bounds = array<i64: 1, 512>}, {transform_indices = @transform_5, window_bounds = array<i64: 8, 512>}]} {
    %c0_i32 = arith.constant 0 : i32
    %0 = arith.cmpi eq, %arg0, %c0_i32 : i32
    %1 = arith.extui %0 : i1 to i32
    %c0_i32_0 = arith.constant 0 : i32
    %2 = arith.cmpi ne, %1, %c0_i32_0 : i32
    scf.if %2 {
      %c0_8 = arith.constant 0 : index
      %c0_9 = arith.constant 0 : index
      %c0_10 = arith.constant 0 : index
      %11 = vector.load %arg1[%c0_8, %c0_9, %c0_10] : memref<4x8x1024xi32, #tpu.memory_space<vmem>>, vector<4x8x1024xi32>
      %cst_11 = arith.constant dense<0> : vector<8x1024xi32>
      %12 = vector.multi_reduction <add>, %11, %cst_11 [0] : vector<4x8x1024xi32> to vector<8x1024xi32>
      %13 = arith.sitofp %12 : vector<8x1024xi32> to vector<8x1024xf32>
      %14 = arith.truncf %13 : vector<8x1024xf32> to vector<8x1024xbf16>
      %c0_12 = arith.constant 0 : index
      %c0_13 = arith.constant 0 : index
      %15 = vector.load %arg2[%c0_12, %c0_13] : memref<1024x256xbf16, #tpu.memory_space<vmem>>, vector<1024x256xbf16>
      %cst_14 = arith.constant dense<0.000000e+00> : vector<8x256xf32>
      %16 = tpu.matmul %14, %15, %cst_14 {dimension_numbers = #tpu.dot_dimension_numbers<[1], [0], [0], [1], [0, 0, 1, 1], [], []>} : vector<8x1024xbf16>, vector<1024x256xbf16>, vector<8x256xf32> -> vector<8x256xf32>
      %c0_15 = arith.constant 0 : index
      %c0_16 = arith.constant 0 : index
      %17 = vector.load %arg3[%c0_15, %c0_16] : memref<1x256xf32, #tpu.memory_space<vmem>>, vector<1x256xf32>
      %18 = vector.broadcast %17 : vector<1x256xf32> to vector<8x256xf32>
      %19 = arith.addf %16, %18 : vector<8x256xf32>
      %c0_17 = arith.constant 0 : index
      %c0_18 = arith.constant 0 : index
      %20 = vector.load %arg7[%c0_17, %c0_18] : memref<8x256xf32, #tpu.memory_space<vmem>>, vector<8x256xf32>
      tpu.vector_store %arg7[%c0_17, %c0_18], %19 {strides = array<i32>} : memref<8x256xf32, #tpu.memory_space<vmem>>, vector<8x256xf32>,
    } else {
    }
    %c0 = arith.constant 0 : index
    %c0_1 = arith.constant 0 : index
    %3 = vector.load %arg7[%c0, %c0_1] : memref<8x256xf32, #tpu.memory_space<vmem>>, vector<8x256xf32>
    %4 = arith.truncf %3 : vector<8x256xf32> to vector<8x256xbf16>
    %c0_2 = arith.constant 0 : index
    %c0_3 = arith.constant 0 : index
    %5 = vector.load %arg4[%c0_2, %c0_3] : memref<256x512xbf16, #tpu.memory_space<vmem>>, vector<256x512xbf16>
    %cst = arith.constant dense<0.000000e+00> : vector<8x512xf32>
    %6 = tpu.matmul %4, %5, %cst {dimension_numbers = #tpu.dot_dimension_numbers<[1], [0], [0], [1], [0, 0, 1, 1], [], []>} : vector<8x256xbf16>, vector<256x512xbf16>, vector<8x512xf32> -> vector<8x512xf32>
    %c0_4 = arith.constant 0 : index
    %c0_5 = arith.constant 0 : index
    %7 = vector.load %arg5[%c0_4, %c0_5] : memref<1x512xf32, #tpu.memory_space<vmem>>, vector<1x512xf32>
    %8 = vector.broadcast %7 : vector<1x512xf32> to vector<8x512xf32>
    %9 = arith.addf %6, %8 : vector<8x512xf32>
    %c0_6 = arith.constant 0 : index
    %c0_7 = arith.constant 0 : index
    %10 = vector.load %arg6[%c0_6, %c0_7] : memref<8x512xf32, #tpu.memory_space<vmem>>, vector<8x512xf32>
    tpu.vector_store %arg6[%c0_6, %c0_7], %9 {strides = array<i32>} : memref<8x512xf32, #tpu.memory_space<vmem>>, vector<8x512xf32>,
    return
  }
  func.func @transform_0(%arg0: i32) -> (i32, i32, i32) {
    %c0_i32 = arith.constant 0 : i32
    %c0_i32_0 = arith.constant 0 : i32
    %c0_i32_1 = arith.constant 0 : i32
    %c0_i32_2 = arith.constant 0 : i32
    return %c0_i32, %c0_i32_0, %c0_i32_1 : i32, i32, i32
  }
  func.func @transform_1(%arg0: i32) -> (i32, i32) {
    %c0_i32 = arith.constant 0 : i32
    %c0_i32_0 = arith.constant 0 : i32
    %c0_i32_1 = arith.constant 0 : i32
    return %c0_i32, %c0_i32_0 : i32, i32
  }
  func.func @transform_2(%arg0: i32) -> (i32, i32) {
    %c0_i32 = arith.constant 0 : i32
    %c0_i32_0 = arith.constant 0 : i32
    %c0_i32_1 = arith.constant 0 : i32
    return %c0_i32, %c0_i32_0 : i32, i32
  }
  func.func @transform_3(%arg0: i32) -> (i32, i32) {
    %c0_i32 = arith.constant 0 : i32
    %c0_i32_0 = arith.constant 0 : i32
    return %c0_i32, %arg0 : i32, i32
  }
  func.func @transform_4(%arg0: i32) -> (i32, i32) {
    %c0_i32 = arith.constant 0 : i32
    %c0_i32_0 = arith.constant 0 : i32
    return %c0_i32, %arg0 : i32, i32
  }
  func.func @transform_5(%arg0: i32) -> (i32, i32) {
    %c0_i32 = arith.constant 0 : i32
    %c0_i32_0 = arith.constant 0 : i32
    return %c0_i32, %arg0 : i32, i32
  }
}

</mosaic_0001>

<llo_original>
// kernel: tpu_custom_call.1
$region0: #{tpu_custom_call.1}
  #allocation0 [shape = 'u32[]', space=smem, size = 0x4, offset = 0x4, fixed_abs, tag = 'smem constant byte address 0x4 - core index']
  #allocation1 [shape = 'u32[72,128]{1,0:T(1,128)}', space=vmem, size = 0x9000, scoped, tag = 'internal scratch']
  #allocation2 [shape = 'f32[8,256]{1,0:T(8,128)}', space=vmem, size = 0x2000, scoped, tag = 'scratch operand']
  %s0 = inlined_call_operand.hbm [shape: s32[4,8,1024], index: 0, kind: input, shape index: {}]
  %s1 = inlined_call_operand.hbm [shape: bf16[1024,256], index: 1, kind: input, shape index: {}]
  %s2 = inlined_call_operand.hbm [shape: f32[1,256], index: 2, kind: input, shape index: {}]
  %s3 = inlined_call_operand.hbm [shape: bf16[256,1024], index: 3, kind: input, shape index: {}]
  %s4 = inlined_call_operand.hbm [shape: f32[1,1024], index: 4, kind: input, shape index: {}]
  %s5 = inlined_call_operand.hbm [shape: f32[8,1024], index: 5, kind: output, shape index: {}]
  %s6 = sld [smem:[#allocation0]]
  $region77: #{tpu_custom_call.1} parent=0
    _
  %s8 = ssub.s32 1, %s6
  %s9 = scalar_select 0, %s8, %s6
  $region1: #{tpu_custom_call.1} parent=0
    #allocation3 [shape = 'u8[131072]{0}', space=vmem, size = 0x20000, scoped, tag = 'input window, operand 0, single buffered']
    #allocation4 [shape = 's32[2]{0}', space=sflag, size = 0x8, scoped, tag = 'scoped memory for tpu_custom_call.1']
    #allocation5 [shape = 's32[2]{0}', space=sflag, size = 0x8, scoped, tag = 'scoped memory for tpu_custom_call.1']
    #allocation6 [shape = 'u8[524288]{0}', space=vmem, size = 0x80000, scoped, tag = 'input window, operand 1, single buffered']
    #allocation7 [shape = 's32[1]{0}', space=sflag, size = 0x4, scoped, tag = 'scoped memory for tpu_custom_call.1']
    #allocation8 [shape = 'u8[1024]{0}', space=vmem, size = 0x400, scoped, tag = 'input window, operand 2, single buffered']
    #allocation9 [shape = 'u8[524288]{0}', space=vmem, size = 0x80000, scoped, tag = 'input window, operand 3']
    #allocation10 [shape = 's32[2]{0}', space=sflag, size = 0x8, scoped, tag = 'scoped memory for tpu_custom_call.1']
    #allocation11 [shape = 'u8[4096]{0}', space=vmem, size = 0x1000, scoped, tag = 'input window, operand 4']
    #allocation12 [shape = 'u8[32768]{0}', space=vmem, size = 0x8000, scoped, tag = 'output window, operand 0']
    %10 = vsyncpa [#allocation4], 0
    %11 = vsyncpa [#allocation7], 0
    %12 = vsyncpa [#allocation10], 0
    %s13 = scalar_lea.sflag [#allocation10], 1
    %14 = vsyncpa %s13, 0
    %15 = vsyncpa [#allocation5], 0
    %s16 = scalar_lea.sflag [#allocation5], 1
    %17 = vsyncpa %s16, 0
    loop: start=0, step=1, limit=4
    $region2: #{tpu_custom_call.1} parent=1 // loop_pre_header
      _
    $region3: #{tpu_custom_call.1} parent=1 // loop_header
      %s19 = sphi 0, %s23
      %p20 = scmp.ge.s32.totalorder %s19, 4
      %s27 = sphi 0, %s27
      %s29 = sphi 0, %s27
      %s30 = sphi 0, %s29
      %s44 = sphi 0, %s30
      %s48 = sphi 0, %s48
      %s50 = sphi 0, %s48
      %s51 = sphi 0, %s50
      %s65 = sphi 0, %s51
      %s69 = sphi 0, %s69
      %s71 = sphi 0, %s69
      %s72 = sphi 0, %s71
      %s86 = sphi 0, %s72
      %s92 = sphi 0, %s94
      %s95 = sphi 0, %s92
      %s96 = sphi 0, %s95
      %s112 = sphi 0, %s96
      %s118 = sphi 0, %s120
      %s121 = sphi 0, %s118
      %s122 = sphi 0, %s121
      %s138 = sphi 0, %s122
      %s144 = sphi 0, %s146
      %s147 = sphi 0, %s144
      %s148 = sphi 0, %s147
      %s164 = sphi 0, %s148
    $region4: #{tpu_custom_call.1} parent=1 // loop_header_branch
      %22 = sbr.rel (%p20) target = $region8
    $region5: #{tpu_custom_call.1} parent=1 // loop_body
      %s24 = ssub.s32 %s19, 1
      %s25 = ssub.s32 %s19, 2
      %s26 = sadd.s32 %s19, 1
      %s28 = sadd.s32 %s27, 1
      %p31 = scmp.eq.s32.totalorder %s19, 1
      %p32 = scmp.ne.s32.totalorder %s27, %s29
      %p33 = scmp.eq.s32.totalorder %s19, 0
      %p34 = por %p32, %p33
      %p35 = scmp.ne.s32.totalorder %s27, %s29
      %p36 = scmp.eq.s32.totalorder %s24, 1
      %p37 = por %p35, %p36
      %p38 = scmp.ne.s32.totalorder %s29, %s30
      %p39 = scmp.eq.s32.totalorder %s24, 0
      %p40 = por %p38, %p39
      %p41 = scmp.ne.s32.totalorder %s29, %s30
      %p42 = scmp.eq.s32.totalorder %s25, 1
      %p43 = por %p41, %p42
      %p45 = scmp.ne.s32.totalorder %s30, %s44
      %p46 = scmp.eq.s32.totalorder %s25, 0
      %p47 = por %p45, %p46
      %s49 = sadd.s32 %s48, 1
      %p52 = scmp.eq.s32.totalorder %s19, 1
      %p53 = scmp.ne.s32.totalorder %s48, %s50
      %p54 = scmp.eq.s32.totalorder %s19, 0
      %p55 = por %p53, %p54
      %p56 = scmp.ne.s32.totalorder %s48, %s50
      %p57 = scmp.eq.s32.totalorder %s24, 1
      %p58 = por %p56, %p57
      %p59 = scmp.ne.s32.totalorder %s50, %s51
      %p60 = scmp.eq.s32.totalorder %s24, 0
      %p61 = por %p59, %p60
      %p62 = scmp.ne.s32.totalorder %s50, %s51
      %p63 = scmp.eq.s32.totalorder %s25, 1
      %p64 = por %p62, %p63
      %p66 = scmp.ne.s32.totalorder %s51, %s65
      %p67 = scmp.eq.s32.totalorder %s25, 0
      %p68 = por %p66, %p67
      %s70 = sadd.s32 %s69, 1
      %p73 = scmp.eq.s32.totalorder %s19, 1
      %p74 = scmp.ne.s32.totalorder %s69, %s71
      %p75 = scmp.eq.s32.totalorder %s19, 0
      %p76 = por %p74, %p75
      %p77 = scmp.ne.s32.totalorder %s69, %s71
      %p78 = scmp.eq.s32.totalorder %s24, 1
      %p79 = por %p77, %p78
      %p80 = scmp.ne.s32.totalorder %s71, %s72
      %p81 = scmp.eq.s32.totalorder %s24, 0
      %p82 = por %p80, %p81
      %p83 = scmp.ne.s32.totalorder %s71, %s72
      %p84 = scmp.eq.s32.totalorder %s25, 1
      %p85 = por %p83, %p84
      %p87 = scmp.ne.s32.totalorder %s72, %s86
      %p88 = scmp.eq.s32.totalorder %s25, 0
      %p89 = por %p87, %p88
      %s90 = ssub.s32 %s19, %s26
      %p91 = scmp.eq.s32.totalorder %s90, 0
      %s93 = sadd.s32 %s92, 1
      %s94 = scalar_select %p91, %s92, %s93
      %p97 = pneg %p91
      %p98 = scmp.eq.s32.totalorder %s19, 1
      %p99 = por %p97, %p98
      %p100 = scmp.ne.s32.totalorder %s92, %s95
      %p101 = scmp.eq.s32.totalorder %s19, 0
      %p102 = por %p100, %p101
      %p103 = scmp.ne.s32.totalorder %s92, %s95
      %p104 = scmp.eq.s32.totalorder %s24, 1
      %p105 = por %p103, %p104
      %p106 = scmp.ne.s32.totalorder %s95, %s96
      %p107 = scmp.eq.s32.totalorder %s24, 0
      %p108 = por %p106, %p107
      %p109 = scmp.ne.s32.totalorder %s95, %s96
      %p110 = scmp.eq.s32.totalorder %s25, 1
      %p111 = por %p109, %p110
      %p113 = scmp.ne.s32.totalorder %s96, %s112
      %p114 = scmp.eq.s32.totalorder %s25, 0
      %p115 = por %p113, %p114
      %s116 = ssub.s32 %s19, %s26
      %p117 = scmp.eq.s32.totalorder %s116, 0
      %s119 = sadd.s32 %s118, 1
      %s120 = scalar_select %p117, %s118, %s119
      %p123 = pneg %p117
      %p124 = scmp.eq.s32.totalorder %s19, 1
      %p125 = por %p123, %p124
      %p126 = scmp.ne.s32.totalorder %s118, %s121
      %p127 = scmp.eq.s32.totalorder %s19, 0
      %p128 = por %p126, %p127
      %p129 = scmp.ne.s32.totalorder %s118, %s121
      %p130 = scmp.eq.s32.totalorder %s24, 1
      %p131 = por %p129, %p130
      %p132 = scmp.ne.s32.totalorder %s121, %s122
      %p133 = scmp.eq.s32.totalorder %s24, 0
      %p134 = por %p132, %p133
      %p135 = scmp.ne.s32.totalorder %s121, %s122
      %p136 = scmp.eq.s32.totalorder %s25, 1
      %p137 = por %p135, %p136
      %p139 = scmp.ne.s32.totalorder %s122, %s138
      %p140 = scmp.eq.s32.totalorder %s25, 0
      %p141 = por %p139, %p140
      %s142 = ssub.s32 %s19, %s26
      %p143 = scmp.eq.s32.totalorder %s142, 0
      %s145 = sadd.s32 %s144, 1
      %s146 = scalar_select %p143, %s144, %s145
      %p149 = pneg %p143
      %p150 = scmp.eq.s32.totalorder %s19, 1
      %p151 = por %p149, %p150
      %p152 = scmp.ne.s32.totalorder %s144, %s147
      %p153 = scmp.eq.s32.totalorder %s19, 0
      %p154 = por %p152, %p153
      %p155 = scmp.ne.s32.totalorder %s144, %s147
      %p156 = scmp.eq.s32.totalorder %s24, 1
      %p157 = por %p155, %p156
      %p158 = scmp.ne.s32.totalorder %s147, %s148
      %p159 = scmp.eq.s32.totalorder %s24, 0
      %p160 = por %p158, %p159
      %p161 = scmp.ne.s32.totalorder %s147, %s148
      %p162 = scmp.eq.s32.totalorder %s25, 1
      %p163 = por %p161, %p162
      %p165 = scmp.ne.s32.totalorder %s148, %s164
      %p166 = scmp.eq.s32.totalorder %s25, 0
      %p167 = por %p165, %p166
      %p168 = scmp.le.s32.totalorder 1, %s19
      %p169 = scmp.lt.s32.totalorder %s19, 3
      %p170 = pnand %p168, %p169
      %p171 = pneg %p170
      // Predicated region
      $region9: #{tpu_custom_call.1} parent=5 // pred_check
        _
      $region10: #{tpu_custom_call.1} parent=5 // pred_check_branch
        %173 = sbr.rel (%p170) target = $region12
      $region11: #{tpu_custom_call.1} parent=5 // pred_region
        %s174 = ssub.s32 %s19, 1
        // Predicated region
        $region13: #{tpu_custom_call.1} parent=11 // pred_check
          %p175 = pneg %p40
        $region14: #{tpu_custom_call.1} parent=11 // pred_check_branch
          %177 = sbr.rel (%p175) target = $region16
        $region15: #{tpu_custom_call.1} parent=11 // pred_region
          %179 = vsyncadd [#allocation4], 0
          %s180 = sshll.u32 %s0, 4
          %s181 = int_to_ptr.hbm [resolvable:$true] %s180
          %s182 = sshll.u32 [#allocation3], 4
          %s183 = int_to_ptr.vmem [resolvable:$true] %s182
          %188 = dma.hbm_to_vmem [thread:$0]  %s181, 4096, %s183, [#allocation4], 1024, 1024, 64
        $region16: #{tpu_custom_call.1} parent=11 // pred_fallthru
          _
        // Predicated region
        $region17: #{tpu_custom_call.1} parent=11 // pred_check
          %p189 = pneg %p61
        $region18: #{tpu_custom_call.1} parent=11 // pred_check_branch
          %191 = sbr.rel (%p189) target = $region20
        $region19: #{tpu_custom_call.1} parent=11 // pred_region
          %193 = vsyncadd [#allocation7], 0
          %s194 = sshll.u32 %s1, 4
          %s195 = int_to_ptr.hbm [resolvable:$true] %s194
          %s196 = sshll.u32 [#allocation6], 4
          %s197 = int_to_ptr.vmem [resolvable:$true] %s196
          %202 = dma.hbm_to_vmem [thread:$0]  %s195, 16384, %s197, [#allocation7], 128, 128, 8
        $region20: #{tpu_custom_call.1} parent=11 // pred_fallthru
          _
        // Predicated region
        $region21: #{tpu_custom_call.1} parent=11 // pred_check
          %p203 = pneg %p82
        $region22: #{tpu_custom_call.1} parent=11 // pred_check_branch
          %205 = sbr.rel (%p203) target = $region24
        $region23: #{tpu_custom_call.1} parent=11 // pred_region
          %207 = vsyncadd [#allocation7], 0
          %s209 = sshll.u32 %s2, 4
          %s210 = int_to_ptr.hbm [resolvable:$true] %s209
          %s211 = sshll.u32 [#allocation8], 4
          %s212 = int_to_ptr.vmem [resolvable:$true] %s211
          %214 = dma.hbm_to_vmem [thread:$0]  %s210, 32, %s212, [#allocation7]
        $region24: #{tpu_custom_call.1} parent=11 // pred_fallthru
          _
      $region12: #{tpu_custom_call.1} parent=5 // pred_fallthru
        _
      %p215 = scmp.lt.s32.totalorder %s19, 2
      // Predicated region
      $region25: #{tpu_custom_call.1} parent=5 // pred_check
        %p216 = pneg %p215
      $region26: #{tpu_custom_call.1} parent=5 // pred_check_branch
        %218 = sbr.rel (%p216) target = $region28
      $region27: #{tpu_custom_call.1} parent=5 // pred_region
        // Predicated region
        $region29: #{tpu_custom_call.1} parent=27 // pred_check
          %p219 = pneg %p102
        $region30: #{tpu_custom_call.1} parent=27 // pred_check_branch
          %221 = sbr.rel (%p219) target = $region32
        $region31: #{tpu_custom_call.1} parent=27 // pred_region
          %s222 = sand.u32 %s19, 1
          %s223 = scalar_lea.sflag [#allocation10], %s222
          %s224 = sand.u32 %s92, 1
          %s225 = smul.addr %s224, 512
          %s226 = scalar_lea.vmem [#allocation9], %s225
          %s227 = smul.u32 4, %s19
          %229 = vsyncadd %s223, 0
          %s230 = smul.addr %s227, 4
          %s231 = scalar_lea.hbm %s3, %s230
          %s232 = sshll.u32 %s231, 4
          %s233 = int_to_ptr.hbm [resolvable:$true] %s232
          %s234 = sshll.u32 %s226, 4
          %s235 = int_to_ptr.vmem [resolvable:$true] %s234
          %240 = dma.hbm_to_vmem [thread:$0]  %s233, 8192, %s235, %s223, 512, 256, 16
        $region32: #{tpu_custom_call.1} parent=27 // pred_fallthru
          _
        // Predicated region
        $region33: #{tpu_custom_call.1} parent=27 // pred_check
          %p241 = pneg %p128
        $region34: #{tpu_custom_call.1} parent=27 // pred_check_branch
          %243 = sbr.rel (%p241) target = $region36
        $region35: #{tpu_custom_call.1} parent=27 // pred_region
          %s244 = sand.u32 %s19, 1
          %s245 = scalar_lea.sflag [#allocation10], %s244
          %s246 = sand.u32 %s118, 1
          %s247 = smul.addr %s246, 4
          %s248 = scalar_lea.vmem [#allocation11], %s247
          %s249 = smul.u32 4, %s19
          %251 = vsyncadd %s245, 0
          %s252 = scalar_lea.hbm %s4, %s249
          %s254 = sshll.u32 %s252, 4
          %s255 = int_to_ptr.hbm [resolvable:$true] %s254
          %s256 = sshll.u32 %s248, 4
          %s257 = int_to_ptr.vmem [resolvable:$true] %s256
          %259 = dma.hbm_to_vmem [thread:$0]  %s255, 64, %s257, %s245
        $region36: #{tpu_custom_call.1} parent=27 // pred_fallthru
          _
      $region28: #{tpu_custom_call.1} parent=5 // pred_fallthru
        _
      %p260 = scmp.le.s32.totalorder 1, %s19
      %p261 = scmp.lt.s32.totalorder %s19, 3
      %p262 = pnand %p260, %p261
      %p263 = pneg %p262
      // Predicated region
      $region37: #{tpu_custom_call.1} parent=5 // pred_check
        _
      $region38: #{tpu_custom_call.1} parent=5 // pred_check_branch
        %265 = sbr.rel (%p262) target = $region40
      $region39: #{tpu_custom_call.1} parent=5 // pred_region
        %s266 = ssub.s32 %s19, 1
        // Predicated region
        $region41: #{tpu_custom_call.1} parent=39 // pred_check
          %p267 = pneg %p40
        $region42: #{tpu_custom_call.1} parent=39 // pred_check_branch
          %269 = sbr.rel (%p267) target = $region44
        $region43: #{tpu_custom_call.1} parent=39 // pred_region
          %271 = dma.done [#allocation4], 4096
        $region44: #{tpu_custom_call.1} parent=39 // pred_fallthru
          _
        // Predicated region
        $region45: #{tpu_custom_call.1} parent=39 // pred_check
          %p272 = pneg %p61
        $region46: #{tpu_custom_call.1} parent=39 // pred_check_branch
          %274 = sbr.rel (%p272) target = $region48
        $region47: #{tpu_custom_call.1} parent=39 // pred_region
          %276 = dma.done [#allocation7], 16384
        $region48: #{tpu_custom_call.1} parent=39 // pred_fallthru
          _
        // Predicated region
        $region49: #{tpu_custom_call.1} parent=39 // pred_check
          %p277 = pneg %p82
        $region50: #{tpu_custom_call.1} parent=39 // pred_check_branch
          %279 = sbr.rel (%p277) target = $region52
        $region51: #{tpu_custom_call.1} parent=39 // pred_region
          %281 = dma.done [#allocation7], 32
        $region52: #{tpu_custom_call.1} parent=39 // pred_fallthru
          _
        %s282 = sand.u32 %s24, 1
        %s283 = scalar_lea.sflag [#allocation10], %s282
        %s284 = sand.u32 %s95, 1
        %s285 = smul.addr %s284, 512
        %s286 = scalar_lea.vmem [#allocation9], %s285
        // Predicated region
        $region53: #{tpu_custom_call.1} parent=39 // pred_check
          %p287 = pneg %p108
        $region54: #{tpu_custom_call.1} parent=39 // pred_check_branch
          %289 = sbr.rel (%p287) target = $region56
        $region55: #{tpu_custom_call.1} parent=39 // pred_region
          %291 = dma.done %s283, 8192
        $region56: #{tpu_custom_call.1} parent=39 // pred_fallthru
          _
        %s292 = sand.u32 %s24, 1
        %s293 = scalar_lea.sflag [#allocation10], %s292
        %s294 = sand.u32 %s121, 1
        %s295 = smul.addr %s294, 4
        %s296 = scalar_lea.vmem [#allocation11], %s295
        // Predicated region
        $region57: #{tpu_custom_call.1} parent=39 // pred_check
          %p297 = pneg %p134
        $region58: #{tpu_custom_call.1} parent=39 // pred_check_branch
          %299 = sbr.rel (%p297) target = $region60
        $region59: #{tpu_custom_call.1} parent=39 // pred_region
          %301 = dma.done %s293, 64
        $region60: #{tpu_custom_call.1} parent=39 // pred_fallthru
          _
        %p302 = pneg %p40
        %p303 = pneg %p37
        %p304 = pneg %p61
        %p305 = pneg %p58
        %p306 = pneg %p82
        %p307 = pneg %p79
        %s308 = sand.u32 %s24, 1
        %s309 = scalar_lea.sflag [#allocation10], %s308
        %s310 = sand.u32 %s95, 1
        %s311 = smul.addr %s310, 512
        %s312 = scalar_lea.vmem [#allocation9], %s311
        %p313 = pneg %p108
        %p314 = pneg %p105
        %s315 = sand.u32 %s24, 1
        %s316 = scalar_lea.sflag [#allocation10], %s315
        %s317 = sand.u32 %s121, 1
        %s318 = smul.addr %s317, 4
        %s319 = scalar_lea.vmem [#allocation11], %s318
        %p320 = pneg %p134
        %p321 = pneg %p131
        %p322 = pneg %p160
        %p323 = pneg %p157
        %s324 = sand.u32 %s147, 1
        %s325 = scalar_lea.sflag [#allocation5], %s324
        %s326 = sand.u32 %s147, 1
        %s327 = smul.addr %s326, 32
        %s328 = scalar_lea.vmem [#allocation12], %s327
        %s329 = smul.u32 4, %s24
        %s330 = smul.u32 4, %s24
        %s331 = smul.u32 4, %s24
        %p332 = scmp.eq.s32.totalorder %s24, 0
        // Predicated region
        $region61: #{tpu_custom_call.1} parent=39 // pred_check
          %p333 = pneg %p332
        $region62: #{tpu_custom_call.1} parent=39 // pred_check_branch
          %335 = sbr.rel (%p333) target = $region64
        $region63: #{tpu_custom_call.1} parent=39 // pred_region
          %v336 = vld [vmem:[#allocation3] sm:$0xff]
          %v337 = vld [vmem:[#allocation3 + $0x8] sm:$0xff]
          %v338 = vld [vmem:[#allocation3 + $0x10] sm:$0xff]
          %v339 = vld [vmem:[#allocation3 + $0x18] sm:$0xff]
          %v340 = vld [vmem:[#allocation3 + $0x20] sm:$0xff]
          %v341 = vld [vmem:[#allocation3 + $0x28] sm:$0xff]
          %v342 = vld [vmem:[#allocation3 + $0x30] sm:$0xff]
          %v343 = vld [vmem:[#allocation3 + $0x38] sm:$0xff]
          %v344 = vld [vmem:[#allocation3 + $0x40] sm:$0xff]
          %v345 = vld [vmem:[#allocation3 + $0x48] sm:$0xff]
          %v346 = vld [vmem:[#allocation3 + $0x50] sm:$0xff]
          %v347 = vld [vmem:[#allocation3 + $0x58] sm:$0xff]
          %v348 = vld [vmem:[#allocation3 + $0x60] sm:$0xff]
          %v349 = vld [vmem:[#allocation3 + $0x68] sm:$0xff]
          %v350 = vld [vmem:[#allocation3 + $0x70] sm:$0xff]
          %v351 = vld [vmem:[#allocation3 + $0x78] sm:$0xff]
          %v352 = vld [vmem:[#allocation3 + $0x80] sm:$0xff]
          %v353 = vld [vmem:[#allocation3 + $0x88] sm:$0xff]
          %v354 = vld [vmem:[#allocation3 + $0x90] sm:$0xff]
          %v355 = vld [vmem:[#allocation3 + $0x98] sm:$0xff]
          %v356 = vld [vmem:[#allocation3 + $0xa0] sm:$0xff]
          %v357 = vld [vmem:[#allocation3 + $0xa8] sm:$0xff]
          %v358 = vld [vmem:[#allocation3 + $0xb0] sm:$0xff]
          %v359 = vld [vmem:[#allocation3 + $0xb8] sm:$0xff]
          %v360 = vld [vmem:[#allocation3 + $0xc0] sm:$0xff]
          %v361 = vld [vmem:[#allocation3 + $0xc8] sm:$0xff]
          %v362 = vld [vmem:[#allocation3 + $0xd0] sm:$0xff]
          %v363 = vld [vmem:[#allocation3 + $0xd8] sm:$0xff]
          %v364 = vld [vmem:[#allocation3 + $0xe0] sm:$0xff]
          %v365 = vld [vmem:[#allocation3 + $0xe8] sm:$0xff]
          %v366 = vld [vmem:[#allocation3 + $0xf0] sm:$0xff]
          %v367 = vld [vmem:[#allocation3 + $0xf8] sm:$0xff]
          %v368 = vadd.s32 %v336, %v344
          %v369 = vadd.s32 %v368, %v352
          %v370 = vadd.s32 %v369, %v360
          %v371 = vadd.s32 %v337, %v345
          %v372 = vadd.s32 %v371, %v353
          %v373 = vadd.s32 %v372, %v361
          %v374 = vadd.s32 %v338, %v346
          %v375 = vadd.s32 %v374, %v354
          %v376 = vadd.s32 %v375, %v362
          %v377 = vadd.s32 %v339, %v347
          %v378 = vadd.s32 %v377, %v355
          %v379 = vadd.s32 %v378, %v363
          %v380 = vadd.s32 %v340, %v348
          %v381 = vadd.s32 %v380, %v356
          %v382 = vadd.s32 %v381, %v364
          %v383 = vadd.s32 %v341, %v349
          %v384 = vadd.s32 %v383, %v357
          %v385 = vadd.s32 %v384, %v365
          %v386 = vadd.s32 %v342, %v350
          %v387 = vadd.s32 %v386, %v358
          %v388 = vadd.s32 %v387, %v366
          %v389 = vadd.s32 %v343, %v351
          %v390 = vadd.s32 %v389, %v359
          %v391 = vadd.s32 %v390, %v367
          %v392 = vcvt.s32.f32 %v370
          %v393 = vcvt.s32.f32 %v373
          %v394 = vcvt.s32.f32 %v376
          %v395 = vcvt.s32.f32 %v379
          %v396 = vcvt.s32.f32 %v382
          %v397 = vcvt.s32.f32 %v385
          %v398 = vcvt.s32.f32 %v388
          %v399 = vcvt.s32.f32 %v391
          %v400 = vpack.c.bf16 %v392, %v392
          %v401 = vpack.c.bf16 %v393, %v393
          %v402 = vpack.c.bf16 %v394, %v394
          %v403 = vpack.c.bf16 %v395, %v395
          %v404 = vpack.c.bf16 %v396, %v396
          %v405 = vpack.c.bf16 %v397, %v397
          %v406 = vpack.c.bf16 %v398, %v398
          %v407 = vpack.c.bf16 %v399, %v399
          %v408 = vld [vmem:[#allocation6] sm:$0xff]
          %v409 = vld [vmem:[#allocation6 + $0x8] sm:$0xff]
          %v410 = vld [vmem:[#allocation6 + $0x10] sm:$0xff]
          %v411 = vld [vmem:[#allocation6 + $0x18] sm:$0xff]
          %v412 = vld [vmem:[#allocation6 + $0x20] sm:$0xff]
          %v413 = vld [vmem:[#allocation6 + $0x28] sm:$0xff]
          %v414 = vld [vmem:[#allocation6 + $0x30] sm:$0xff]
          %v415 = vld [vmem:[#allocation6 + $0x38] sm:$0xff]
          %v416 = vld [vmem:[#allocation6 + $0x40] sm:$0xff]
          %v417 = vld [vmem:[#allocation6 + $0x48] sm:$0xff]
          %v418 = vld [vmem:[#allocation6 + $0x50] sm:$0xff]
          %v419 = vld [vmem:[#allocation6 + $0x58] sm:$0xff]
          %v420 = vld [vmem:[#allocation6 + $0x60] sm:$0xff]
          %v421 = vld [vmem:[#allocation6 + $0x68] sm:$0xff]
          %v422 = vld [vmem:[#allocation6 + $0x70] sm:$0xff]
          %v423 = vld [vmem:[#allocation6 + $0x78] sm:$0xff]
          %v424 = vld [vmem:[#allocation6 + $0x80] sm:$0xff]
          %v425 = vld [vmem:[#allocation6 + $0x88] sm:$0xff]
          %v426 = vld [vmem:[#allocation6 + $0x90] sm:$0xff]
          %v427 = vld [vmem:[#allocation6 + $0x98] sm:$0xff]
          %v428 = vld [vmem:[#allocation6 + $0xa0] sm:$0xff]
          %v429 = vld [vmem:[#allocation6 + $0xa8] sm:$0xff]
          %v430 = vld [vmem:[#allocation6 + $0xb0] sm:$0xff]
          %v431 = vld [vmem:[#allocation6 + $0xb8] sm:$0xff]
          %v432 = vld [vmem:[#allocation6 + $0xc0] sm:$0xff]
          %v433 = vld [vmem:[#allocation6 + $0xc8] sm:$0xff]
          %v434 = vld [vmem:[#allocation6 + $0xd0] sm:$0xff]
          %v435 = vld [vmem:[#allocation6 + $0xd8] sm:$0xff]
          %v436 = vld [vmem:[#allocation6 + $0xe0] sm:$0xff]
          %v437 = vld [vmem:[#allocation6 + $0xe8] sm:$0xff]
          %v438 = vld [vmem:[#allocation6 + $0xf0] sm:$0xff]
          %v439 = vld [vmem:[#allocation6 + $0xf8] sm:$0xff]
          %v440 = vld [vmem:[#allocation6 + $0x100] sm:$0xff]
          %v441 = vld [vmem:[#allocation6 + $0x108] sm:$0xff]
          %v442 = vld [vmem:[#allocation6 + $0x110] sm:$0xff]
          %v443 = vld [vmem:[#allocation6 + $0x118] sm:$0xff]
          %v444 = vld [vmem:[#allocation6 + $0x120] sm:$0xff]
          %v445 = vld [vmem:[#allocation6 + $0x128] sm:$0xff]
          %v446 = vld [vmem:[#allocation6 + $0x130] sm:$0xff]
          %v447 = vld [vmem:[#allocation6 + $0x138] sm:$0xff]
          %v448 = vld [vmem:[#allocation6 + $0x140] sm:$0xff]
          %v449 = vld [vmem:[#allocation6 + $0x148] sm:$0xff]
          %v450 = vld [vmem:[#allocation6 + $0x150] sm:$0xff]
          %v451 = vld [vmem:[#allocation6 + $0x158] sm:$0xff]
          %v452 = vld [vmem:[#allocation6 + $0x160] sm:$0xff]
          %v453 = vld [vmem:[#allocation6 + $0x168] sm:$0xff]
          %v454 = vld [vmem:[#allocation6 + $0x170] sm:$0xff]
          %v455 = vld [vmem:[#allocation6 + $0x178] sm:$0xff]
          %v456 = vld [vmem:[#allocation6 + $0x180] sm:$0xff]
          %v457 = vld [vmem:[#allocation6 + $0x188] sm:$0xff]
          %v458 = vld [vmem:[#allocation6 + $0x190] sm:$0xff]
          %v459 = vld [vmem:[#allocation6 + $0x198] sm:$0xff]
          %v460 = vld [vmem:[#allocation6 + $0x1a0] sm:$0xff]
          %v461 = vld [vmem:[#allocation6 + $0x1a8] sm:$0xff]
          %v462 = vld [vmem:[#allocation6 + $0x1b0] sm:$0xff]
          %v463 = vld [vmem:[#allocation6 + $0x1b8] sm:$0xff]
          %v464 = vld [vmem:[#allocation6 + $0x1c0] sm:$0xff]
          %v465 = vld [vmem:[#allocation6 + $0x1c8] sm:$0xff]
          %v466 = vld [vmem:[#allocation6 + $0x1d0] sm:$0xff]
          %v467 = vld [vmem:[#allocation6 + $0x1d8] sm:$0xff]
          %v468 = vld [vmem:[#allocation6 + $0x1e0] sm:$0xff]
          %v469 = vld [vmem:[#allocation6 + $0x1e8] sm:$0xff]
          %v470 = vld [vmem:[#allocation6 + $0x1f0] sm:$0xff]
          %v471 = vld [vmem:[#allocation6 + $0x1f8] sm:$0xff]
          %v472 = vld [vmem:[#allocation6 + $0x200] sm:$0xff]
          %v473 = vld [vmem:[#allocation6 + $0x208] sm:$0xff]
          %v474 = vld [vmem:[#allocation6 + $0x210] sm:$0xff]
          %v475 = vld [vmem:[#allocation6 + $0x218] sm:$0xff]
          %v476 = vld [vmem:[#allocation6 + $0x220] sm:$0xff]
          %v477 = vld [vmem:[#allocation6 + $0x228] sm:$0xff]
          %v478 = vld [vmem:[#allocation6 + $0x230] sm:$0xff]
          %v479 = vld [vmem:[#allocation6 + $0x238] sm:$0xff]
          %v480 = vld [vmem:[#allocation6 + $0x240] sm:$0xff]
          %v481 = vld [vmem:[#allocation6 + $0x248] sm:$0xff]
          %v482 = vld [vmem:[#allocation6 + $0x250] sm:$0xff]
          %v483 = vld [vmem:[#allocation6 + $0x258] sm:$0xff]
          %v484 = vld [vmem:[#allocation6 + $0x260] sm:$0xff]
          %v485 = vld [vmem:[#allocation6 + $0x268] sm:$0xff]
          %v486 = vld [vmem:[#allocation6 + $0x270] sm:$0xff]
          %v487 = vld [vmem:[#allocation6 + $0x278] sm:$0xff]
          %v488 = vld [vmem:[#allocation6 + $0x280] sm:$0xff]
          %v489 = vld [vmem:[#allocation6 + $0x288] sm:$0xff]
          %v490 = vld [vmem:[#allocation6 + $0x290] sm:$0xff]
          %v491 = vld [vmem:[#allocation6 + $0x298] sm:$0xff]
          %v492 = vld [vmem:[#allocation6 + $0x2a0] sm:$0xff]
          %v493 = vld [vmem:[#allocation6 + $0x2a8] sm:$0xff]
          %v494 = vld [vmem:[#allocation6 + $0x2b0] sm:$0xff]
          %v495 = vld [vmem:[#allocation6 + $0x2b8] sm:$0xff]
          %v496 = vld [vmem:[#allocation6 + $0x2c0] sm:$0xff]
          %v497 = vld [vmem:[#allocation6 + $0x2c8] sm:$0xff]
          %v498 = vld [vmem:[#allocation6 + $0x2d0] sm:$0xff]
          %v499 = vld [vmem:[#allocation6 + $0x2d8] sm:$0xff]
          %v500 = vld [vmem:[#allocation6 + $0x2e0] sm:$0xff]
          %v501 = vld [vmem:[#allocation6 + $0x2e8] sm:$0xff]
          %v502 = vld [vmem:[#allocation6 + $0x2f0] sm:$0xff]
          %v503 = vld [vmem:[#allocation6 + $0x2f8] sm:$0xff]
          %v504 = vld [vmem:[#allocation6 + $0x300] sm:$0xff]
          %v505 = vld [vmem:[#allocation6 + $0x308] sm:$0xff]
          %v506 = vld [vmem:[#allocation6 + $0x310] sm:$0xff]
          %v507 = vld [vmem:[#allocation6 + $0x318] sm:$0xff]
          %v508 = vld [vmem:[#allocation6 + $0x320] sm:$0xff]
          %v509 = vld [vmem:[#allocation6 + $0x328] sm:$0xff]
          %v510 = vld [vmem:[#allocation6 + $0x330] sm:$0xff]
          %v511 = vld [vmem:[#allocation6 + $0x338] sm:$0xff]
          %v512 = vld [vmem:[#allocation6 + $0x340] sm:$0xff]
          %v513 = vld [vmem:[#allocation6 + $0x348] sm:$0xff]
          %v514 = vld [vmem:[#allocation6 + $0x350] sm:$0xff]
          %v515 = vld [vmem:[#allocation6 + $0x358] sm:$0xff]
          %v516 = vld [vmem:[#allocation6 + $0x360] sm:$0xff]
          %v517 = vld [vmem:[#allocation6 + $0x368] sm:$0xff]
          %v518 = vld [vmem:[#allocation6 + $0x370] sm:$0xff]
          %v519 = vld [vmem:[#allocation6 + $0x378] sm:$0xff]
          %v520 = vld [vmem:[#allocation6 + $0x380] sm:$0xff]
          %v521 = vld [vmem:[#allocation6 + $0x388] sm:$0xff]
          %v522 = vld [vmem:[#allocation6 + $0x390] sm:$0xff]
          %v523 = vld [vmem:[#allocation6 + $0x398] sm:$0xff]
          %v524 = vld [vmem:[#allocation6 + $0x3a0] sm:$0xff]
          %v525 = vld [vmem:[#allocation6 + $0x3a8] sm:$0xff]
          %v526 = vld [vmem:[#allocation6 + $0x3b0] sm:$0xff]
          %v527 = vld [vmem:[#allocation6 + $0x3b8] sm:$0xff]
          %v528 = vld [vmem:[#allocation6 + $0x3c0] sm:$0xff]
          %v529 = vld [vmem:[#allocation6 + $0x3c8] sm:$0xff]
          %v530 = vld [vmem:[#allocation6 + $0x3d0] sm:$0xff]
          %v531 = vld [vmem:[#allocation6 + $0x3d8] sm:$0xff]
          %v532 = vld [vmem:[#allocation6 + $0x3e0] sm:$0xff]
          %v533 = vld [vmem:[#allocation6 + $0x3e8] sm:$0xff]
          %v534 = vld [vmem:[#allocation6 + $0x3f0] sm:$0xff]
          %v535 = vld [vmem:[#allocation6 + $0x3f8] sm:$0xff]
          %v536 = vld [vmem:[#allocation8] sm:$0x3]
          %v538 = vperm.slane %v536, 0
          %v539 = vperm.slane %v536, 1
          %v670 = vunpack.c.l.b16 %v408
          %v671 = vunpack.c.h.b16 %v408
          %v672 = vunpack.c.l.b16 %v409
          %v673 = vunpack.c.h.b16 %v409
          %v674 = vunpack.c.l.b16 %v410
          %v675 = vunpack.c.h.b16 %v410
          %v676 = vunpack.c.l.b16 %v411
          %v677 = vunpack.c.h.b16 %v411
          %v678 = vunpack.c.l.b16 %v412
          %v679 = vunpack.c.h.b16 %v412
          %v680 = vunpack.c.l.b16 %v413
          %v681 = vunpack.c.h.b16 %v413
          %v682 = vunpack.c.l.b16 %v414
          %v683 = vunpack.c.h.b16 %v414
          %v684 = vunpack.c.l.b16 %v415
          %v685 = vunpack.c.h.b16 %v415
          %v686 = vunpack.c.l.b16 %v416
          %v687 = vunpack.c.h.b16 %v416
          %v688 = vunpack.c.l.b16 %v417
          %v689 = vunpack.c.h.b16 %v417
          %v690 = vunpack.c.l.b16 %v418
          %v691 = vunpack.c.h.b16 %v418
          %v692 = vunpack.c.l.b16 %v419
          %v693 = vunpack.c.h.b16 %v419
          %v694 = vunpack.c.l.b16 %v420
          %v695 = vunpack.c.h.b16 %v420
          %v696 = vunpack.c.l.b16 %v421
          %v697 = vunpack.c.h.b16 %v421
          %v698 = vunpack.c.l.b16 %v422
          %v699 = vunpack.c.h.b16 %v422
          %v700 = vunpack.c.l.b16 %v423
          %v701 = vunpack.c.h.b16 %v423
          %v702 = vunpack.c.l.b16 %v424
          %v703 = vunpack.c.h.b16 %v424
          %v704 = vunpack.c.l.b16 %v425
          %v705 = vunpack.c.h.b16 %v425
          %v706 = vunpack.c.l.b16 %v426
          %v707 = vunpack.c.h.b16 %v426
          %v708 = vunpack.c.l.b16 %v427
          %v709 = vunpack.c.h.b16 %v427
          %v710 = vunpack.c.l.b16 %v428
          %v711 = vunpack.c.h.b16 %v428
          %v712 = vunpack.c.l.b16 %v429
          %v713 = vunpack.c.h.b16 %v429
          %v714 = vunpack.c.l.b16 %v430
          %v715 = vunpack.c.h.b16 %v430
          %v716 = vunpack.c.l.b16 %v431
          %v717 = vunpack.c.h.b16 %v431
          %v718 = vunpack.c.l.b16 %v432
          %v719 = vunpack.c.h.b16 %v432
          %v720 = vunpack.c.l.b16 %v433
          %v721 = vunpack.c.h.b16 %v433
          %v722 = vunpack.c.l.b16 %v434
          %v723 = vunpack.c.h.b16 %v434
          %v724 = vunpack.c.l.b16 %v435
          %v725 = vunpack.c.h.b16 %v435
          %v726 = vunpack.c.l.b16 %v436
          %v727 = vunpack.c.h.b16 %v436
          %v728 = vunpack.c.l.b16 %v437
          %v729 = vunpack.c.h.b16 %v437
          %v730 = vunpack.c.l.b16 %v438
          %v731 = vunpack.c.h.b16 %v438
          %v732 = vunpack.c.l.b16 %v439
          %v733 = vunpack.c.h.b16 %v439
          %v734 = vunpack.c.l.b16 %v440
          %v735 = vunpack.c.h.b16 %v440
          %v736 = vunpack.c.l.b16 %v441
          %v737 = vunpack.c.h.b16 %v441
          %v738 = vunpack.c.l.b16 %v442
          %v739 = vunpack.c.h.b16 %v442
          %v740 = vunpack.c.l.b16 %v443
          %v741 = vunpack.c.h.b16 %v443
          %v742 = vunpack.c.l.b16 %v444
          %v743 = vunpack.c.h.b16 %v444
          %v744 = vunpack.c.l.b16 %v445
          %v745 = vunpack.c.h.b16 %v445
          %v746 = vunpack.c.l.b16 %v446
          %v747 = vunpack.c.h.b16 %v446
          %v748 = vunpack.c.l.b16 %v447
          %v749 = vunpack.c.h.b16 %v447
          %v750 = vunpack.c.l.b16 %v448
          %v751 = vunpack.c.h.b16 %v448
          %v752 = vunpack.c.l.b16 %v449
          %v753 = vunpack.c.h.b16 %v449
          %v754 = vunpack.c.l.b16 %v450
          %v755 = vunpack.c.h.b16 %v450
          %v756 = vunpack.c.l.b16 %v451
          %v757 = vunpack.c.h.b16 %v451
          %v758 = vunpack.c.l.b16 %v452
          %v759 = vunpack.c.h.b16 %v452
          %v760 = vunpack.c.l.b16 %v453
          %v761 = vunpack.c.h.b16 %v453
          %v762 = vunpack.c.l.b16 %v454
          %v763 = vunpack.c.h.b16 %v454
          %v764 = vunpack.c.l.b16 %v455
          %v765 = vunpack.c.h.b16 %v455
          %v766 = vunpack.c.l.b16 %v456
          %v767 = vunpack.c.h.b16 %v456
          %v768 = vunpack.c.l.b16 %v457
          %v769 = vunpack.c.h.b16 %v457
          %v770 = vunpack.c.l.b16 %v458
          %v771 = vunpack.c.h.b16 %v458
          %v772 = vunpack.c.l.b16 %v459
          %v773 = vunpack.c.h.b16 %v459
          %v774 = vunpack.c.l.b16 %v460
          %v775 = vunpack.c.h.b16 %v460
          %v776 = vunpack.c.l.b16 %v461
          %v777 = vunpack.c.h.b16 %v461
          %v778 = vunpack.c.l.b16 %v462
          %v779 = vunpack.c.h.b16 %v462
          %v780 = vunpack.c.l.b16 %v463
          %v781 = vunpack.c.h.b16 %v463
          %v782 = vunpack.c.l.b16 %v464
          %v783 = vunpack.c.h.b16 %v464
          %v784 = vunpack.c.l.b16 %v465
          %v785 = vunpack.c.h.b16 %v465
          %v786 = vunpack.c.l.b16 %v466
          %v787 = vunpack.c.h.b16 %v466
          %v788 = vunpack.c.l.b16 %v467
          %v789 = vunpack.c.h.b16 %v467
          %v790 = vunpack.c.l.b16 %v468
          %v791 = vunpack.c.h.b16 %v468
          %v792 = vunpack.c.l.b16 %v469
          %v793 = vunpack.c.h.b16 %v469
          %v794 = vunpack.c.l.b16 %v470
          %v795 = vunpack.c.h.b16 %v470
          %v796 = vunpack.c.l.b16 %v471
          %v797 = vunpack.c.h.b16 %v471
          %v798 = vunpack.c.l.b16 %v472
          %v799 = vunpack.c.h.b16 %v472
          %v800 = vunpack.c.l.b16 %v473
          %v801 = vunpack.c.h.b16 %v473
          %v802 = vunpack.c.l.b16 %v474
          %v803 = vunpack.c.h.b16 %v474
          %v804 = vunpack.c.l.b16 %v475
          %v805 = vunpack.c.h.b16 %v475
          %v806 = vunpack.c.l.b16 %v476
          %v807 = vunpack.c.h.b16 %v476
          %v808 = vunpack.c.l.b16 %v477
          %v809 = vunpack.c.h.b16 %v477
          %v810 = vunpack.c.l.b16 %v478
          %v811 = vunpack.c.h.b16 %v478
          %v812 = vunpack.c.l.b16 %v479
          %v813 = vunpack.c.h.b16 %v479
          %v814 = vunpack.c.l.b16 %v480
          %v815 = vunpack.c.h.b16 %v480
          %v816 = vunpack.c.l.b16 %v481
          %v817 = vunpack.c.h.b16 %v481
          %v818 = vunpack.c.l.b16 %v482
          %v819 = vunpack.c.h.b16 %v482
          %v820 = vunpack.c.l.b16 %v483
          %v821 = vunpack.c.h.b16 %v483
          %v822 = vunpack.c.l.b16 %v484
          %v823 = vunpack.c.h.b16 %v484
          %v824 = vunpack.c.l.b16 %v485
          %v825 = vunpack.c.h.b16 %v485
          %v826 = vunpack.c.l.b16 %v486
          %v827 = vunpack.c.h.b16 %v486
          %v828 = vunpack.c.l.b16 %v487
          %v829 = vunpack.c.h.b16 %v487
          %v830 = vunpack.c.l.b16 %v488
          %v831 = vunpack.c.h.b16 %v488
          %v832 = vunpack.c.l.b16 %v489
          %v833 = vunpack.c.h.b16 %v489
          %v834 = vunpack.c.l.b16 %v490
          %v835 = vunpack.c.h.b16 %v490
          %v836 = vunpack.c.l.b16 %v491
          %v837 = vunpack.c.h.b16 %v491
          %v838 = vunpack.c.l.b16 %v492
          %v839 = vunpack.c.h.b16 %v492
          %v840 = vunpack.c.l.b16 %v493
          %v841 = vunpack.c.h.b16 %v493
          %v842 = vunpack.c.l.b16 %v494
          %v843 = vunpack.c.h.b16 %v494
          %v844 = vunpack.c.l.b16 %v495
          %v845 = vunpack.c.h.b16 %v495
          %v846 = vunpack.c.l.b16 %v496
          %v847 = vunpack.c.h.b16 %v496
          %v848 = vunpack.c.l.b16 %v497
          %v849 = vunpack.c.h.b16 %v497
          %v850 = vunpack.c.l.b16 %v498
          %v851 = vunpack.c.h.b16 %v498
          %v852 = vunpack.c.l.b16 %v499
          %v853 = vunpack.c.h.b16 %v499
          %v854 = vunpack.c.l.b16 %v500
          %v855 = vunpack.c.h.b16 %v500
          %v856 = vunpack.c.l.b16 %v501
          %v857 = vunpack.c.h.b16 %v501
          %v858 = vunpack.c.l.b16 %v502
          %v859 = vunpack.c.h.b16 %v502
          %v860 = vunpack.c.l.b16 %v503
          %v861 = vunpack.c.h.b16 %v503
          %v862 = vunpack.c.l.b16 %v504
          %v863 = vunpack.c.h.b16 %v504
          %v864 = vunpack.c.l.b16 %v505
          %v865 = vunpack.c.h.b16 %v505
          %v866 = vunpack.c.l.b16 %v506
          %v867 = vunpack.c.h.b16 %v506
          %v868 = vunpack.c.l.b16 %v507
          %v869 = vunpack.c.h.b16 %v507
          %v870 = vunpack.c.l.b16 %v508
          %v871 = vunpack.c.h.b16 %v508
          %v872 = vunpack.c.l.b16 %v509
          %v873 = vunpack.c.h.b16 %v509
          %v874 = vunpack.c.l.b16 %v510
          %v875 = vunpack.c.h.b16 %v510
          %v876 = vunpack.c.l.b16 %v511
          %v877 = vunpack.c.h.b16 %v511
          %v878 = vunpack.c.l.b16 %v512
          %v879 = vunpack.c.h.b16 %v512
          %v880 = vunpack.c.l.b16 %v513
          %v881 = vunpack.c.h.b16 %v513
          %v882 = vunpack.c.l.b16 %v514
          %v883 = vunpack.c.h.b16 %v514
          %v884 = vunpack.c.l.b16 %v515
          %v885 = vunpack.c.h.b16 %v515
          %v886 = vunpack.c.l.b16 %v516
          %v887 = vunpack.c.h.b16 %v516
          %v888 = vunpack.c.l.b16 %v517
          %v889 = vunpack.c.h.b16 %v517
          %v890 = vunpack.c.l.b16 %v518
          %v891 = vunpack.c.h.b16 %v518
          %v892 = vunpack.c.l.b16 %v519
          %v893 = vunpack.c.h.b16 %v519
          %v894 = vunpack.c.l.b16 %v520
          %v895 = vunpack.c.h.b16 %v520
          %v896 = vunpack.c.l.b16 %v521
          %v897 = vunpack.c.h.b16 %v521
          %v898 = vunpack.c.l.b16 %v522
          %v899 = vunpack.c.h.b16 %v522
          %v900 = vunpack.c.l.b16 %v523
          %v901 = vunpack.c.h.b16 %v523
          %v902 = vunpack.c.l.b16 %v524
          %v903 = vunpack.c.h.b16 %v524
          %v904 = vunpack.c.l.b16 %v525
          %v905 = vunpack.c.h.b16 %v525
          %v906 = vunpack.c.l.b16 %v526
          %v907 = vunpack.c.h.b16 %v526
          %v908 = vunpack.c.l.b16 %v527
          %v909 = vunpack.c.h.b16 %v527
          %v910 = vunpack.c.l.b16 %v528
          %v911 = vunpack.c.h.b16 %v528
          %v912 = vunpack.c.l.b16 %v529
          %v913 = vunpack.c.h.b16 %v529
          %v914 = vunpack.c.l.b16 %v530
          %v915 = vunpack.c.h.b16 %v530
          %v916 = vunpack.c.l.b16 %v531
          %v917 = vunpack.c.h.b16 %v531
          %v918 = vunpack.c.l.b16 %v532
          %v919 = vunpack.c.h.b16 %v532
          %v920 = vunpack.c.l.b16 %v533
          %v921 = vunpack.c.h.b16 %v533
          %v922 = vunpack.c.l.b16 %v534
          %v923 = vunpack.c.h.b16 %v534
          %v924 = vunpack.c.l.b16 %v535
          %v925 = vunpack.c.h.b16 %v535
          %v926 = vpack.c.b16 %v672, %v670
          %v927 = vpack.c.b16 %v673, %v671
          %v928 = vpack.c.b16 %v676, %v674
          %v929 = vpack.c.b16 %v677, %v675
          %v930 = vpack.c.b16 %v680, %v678
          %v931 = vpack.c.b16 %v681, %v679
          %v932 = vpack.c.b16 %v684, %v682
          %v933 = vpack.c.b16 %v685, %v683
          %v934 = vpack.c.b16 %v688, %v686
          %v935 = vpack.c.b16 %v689, %v687
          %v936 = vpack.c.b16 %v692, %v690
          %v937 = vpack.c.b16 %v693, %v691
          %v938 = vpack.c.b16 %v696, %v694
          %v939 = vpack.c.b16 %v697, %v695
          %v940 = vpack.c.b16 %v700, %v698
          %v941 = vpack.c.b16 %v701, %v699
          %v942 = vpack.c.b16 %v704, %v702
          %v943 = vpack.c.b16 %v705, %v703
          %v944 = vpack.c.b16 %v708, %v706
          %v945 = vpack.c.b16 %v709, %v707
          %v946 = vpack.c.b16 %v712, %v710
          %v947 = vpack.c.b16 %v713, %v711
          %v948 = vpack.c.b16 %v716, %v714
          %v949 = vpack.c.b16 %v717, %v715
          %v950 = vpack.c.b16 %v720, %v718
          %v951 = vpack.c.b16 %v721, %v719
          %v952 = vpack.c.b16 %v724, %v722
          %v953 = vpack.c.b16 %v725, %v723
          %v954 = vpack.c.b16 %v728, %v726
          %v955 = vpack.c.b16 %v729, %v727
          %v956 = vpack.c.b16 %v732, %v730
          %v957 = vpack.c.b16 %v733, %v731
          %v958 = vpack.c.b16 %v736, %v734
          %v959 = vpack.c.b16 %v737, %v735
          %v960 = vpack.c.b16 %v740, %v738
          %v961 = vpack.c.b16 %v741, %v739
          %v962 = vpack.c.b16 %v744, %v742
          %v963 = vpack.c.b16 %v745, %v743
          %v964 = vpack.c.b16 %v748, %v746
          %v965 = vpack.c.b16 %v749, %v747
          %v966 = vpack.c.b16 %v752, %v750
          %v967 = vpack.c.b16 %v753, %v751
          %v968 = vpack.c.b16 %v756, %v754
          %v969 = vpack.c.b16 %v757, %v755
          %v970 = vpack.c.b16 %v760, %v758
          %v971 = vpack.c.b16 %v761, %v759
          %v972 = vpack.c.b16 %v764, %v762
          %v973 = vpack.c.b16 %v765, %v763
          %v974 = vpack.c.b16 %v768, %v766
          %v975 = vpack.c.b16 %v769, %v767
          %v976 = vpack.c.b16 %v772, %v770
          %v977 = vpack.c.b16 %v773, %v771
          %v978 = vpack.c.b16 %v776, %v774
          %v979 = vpack.c.b16 %v777, %v775
          %v980 = vpack.c.b16 %v780, %v778
          %v981 = vpack.c.b16 %v781, %v779
          %v982 = vpack.c.b16 %v784, %v782
          %v983 = vpack.c.b16 %v785, %v783
          %v984 = vpack.c.b16 %v788, %v786
          %v985 = vpack.c.b16 %v789, %v787
          %v986 = vpack.c.b16 %v792, %v790
          %v987 = vpack.c.b16 %v793, %v791
          %v988 = vpack.c.b16 %v796, %v794
          %v989 = vpack.c.b16 %v797, %v795
          %v990 = vpack.c.b16 %v800, %v798
          %v991 = vpack.c.b16 %v801, %v799
          %v992 = vpack.c.b16 %v804, %v802
          %v993 = vpack.c.b16 %v805, %v803
          %v994 = vpack.c.b16 %v808, %v806
          %v995 = vpack.c.b16 %v809, %v807
          %v996 = vpack.c.b16 %v812, %v810
          %v997 = vpack.c.b16 %v813, %v811
          %v998 = vpack.c.b16 %v816, %v814
          %v999 = vpack.c.b16 %v817, %v815
          %v1000 = vpack.c.b16 %v820, %v818
          %v1001 = vpack.c.b16 %v821, %v819
          %v1002 = vpack.c.b16 %v824, %v822
          %v1003 = vpack.c.b16 %v825, %v823
          %v1004 = vpack.c.b16 %v828, %v826
          %v1005 = vpack.c.b16 %v829, %v827
          %v1006 = vpack.c.b16 %v832, %v830
          %v1007 = vpack.c.b16 %v833, %v831
          %v1008 = vpack.c.b16 %v836, %v834
          %v1009 = vpack.c.b16 %v837, %v835
          %v1010 = vpack.c.b16 %v840, %v838
          %v1011 = vpack.c.b16 %v841, %v839
          %v1012 = vpack.c.b16 %v844, %v842
          %v1013 = vpack.c.b16 %v845, %v843
          %v1014 = vpack.c.b16 %v848, %v846
          %v1015 = vpack.c.b16 %v849, %v847
          %v1016 = vpack.c.b16 %v852, %v850
          %v1017 = vpack.c.b16 %v853, %v851
          %v1018 = vpack.c.b16 %v856, %v854
          %v1019 = vpack.c.b16 %v857, %v855
          %v1020 = vpack.c.b16 %v860, %v858
          %v1021 = vpack.c.b16 %v861, %v859
          %v1022 = vpack.c.b16 %v864, %v862
          %v1023 = vpack.c.b16 %v865, %v863
          %v1024 = vpack.c.b16 %v868, %v866
          %v1025 = vpack.c.b16 %v869, %v867
          %v1026 = vpack.c.b16 %v872, %v870
          %v1027 = vpack.c.b16 %v873, %v871
          %v1028 = vpack.c.b16 %v876, %v874
          %v1029 = vpack.c.b16 %v877, %v875
          %v1030 = vpack.c.b16 %v880, %v878
          %v1031 = vpack.c.b16 %v881, %v879
          %v1032 = vpack.c.b16 %v884, %v882
          %v1033 = vpack.c.b16 %v885, %v883
          %v1034 = vpack.c.b16 %v888, %v886
          %v1035 = vpack.c.b16 %v889, %v887
          %v1036 = vpack.c.b16 %v892, %v890
          %v1037 = vpack.c.b16 %v893, %v891
          %v1038 = vpack.c.b16 %v896, %v894
          %v1039 = vpack.c.b16 %v897, %v895
          %v1040 = vpack.c.b16 %v900, %v898
          %v1041 = vpack.c.b16 %v901, %v899
          %v1042 = vpack.c.b16 %v904, %v902
          %v1043 = vpack.c.b16 %v905, %v903
          %v1044 = vpack.c.b16 %v908, %v906
          %v1045 = vpack.c.b16 %v909, %v907
          %v1046 = vpack.c.b16 %v912, %v910
          %v1047 = vpack.c.b16 %v913, %v911
          %v1048 = vpack.c.b16 %v916, %v914
          %v1049 = vpack.c.b16 %v917, %v915
          %v1050 = vpack.c.b16 %v920, %v918
          %v1051 = vpack.c.b16 %v921, %v919
          %v1052 = vpack.c.b16 %v924, %v922
          %v1053 = vpack.c.b16 %v925, %v923
          %1182 = vmatpush.bf16.msra.mxu0 %v940
          %1183 = vmatpush.bf16.msra.mxu0 %v938
          %1184 = vmatpush.bf16.msra.mxu0 %v936
          %1185 = vmatpush.bf16.msra.mxu0 %v934
          %1186 = vmatpush.bf16.msra.mxu0 %v932
          %1187 = vmatpush.bf16.msra.mxu0 %v930
          %1188 = vmatpush.bf16.msra.mxu0 %v928
          %1189 = vmatpush.bf16.msra.mxu0 %v926
          %1190 = vmatmul.bf16.gmra.mxu0 %v400
          %v1191 = vpop.f32.mrf.mxu0
          %v1192 = vadd.f32 %v538, %v1191
          %v1193 = vpop.f32.mrf.mxu0
          %1194 = vdwg.mxu0
          %1195 = vmatpush.bf16.msra.mxu0 %v956
          %1196 = vmatpush.bf16.msra.mxu0 %v954
          %1197 = vmatpush.bf16.msra.mxu0 %v952
          %1198 = vmatpush.bf16.msra.mxu0 %v950
          %1199 = vmatpush.bf16.msra.mxu0 %v948
          %1200 = vmatpush.bf16.msra.mxu0 %v946
          %1201 = vmatpush.bf16.msra.mxu0 %v944
          %1202 = vmatpush.bf16.msra.mxu0 %v942
          %1203 = vmatmul.bf16.gmra.mxu0 %v401
          %v1204 = vpop.f32.mrf.mxu0
          %v1205 = vadd.f32 %v1192, %v1204
          %v1206 = vpop.f32.mrf.mxu0
          %1207 = vdwg.mxu0
          %1208 = vmatpush.bf16.msra.mxu0 %v972
          %1209 = vmatpush.bf16.msra.mxu0 %v970
          %1210 = vmatpush.bf16.msra.mxu0 %v968
          %1211 = vmatpush.bf16.msra.mxu0 %v966
          %1212 = vmatpush.bf16.msra.mxu0 %v964
          %1213 = vmatpush.bf16.msra.mxu0 %v962
          %1214 = vmatpush.bf16.msra.mxu0 %v960
          %1215 = vmatpush.bf16.msra.mxu0 %v958
          %1216 = vmatmul.bf16.gmra.mxu0 %v402
          %v1217 = vpop.f32.mrf.mxu0
          %v1218 = vadd.f32 %v1205, %v1217
          %v1219 = vpop.f32.mrf.mxu0
          %1220 = vdwg.mxu0
          %1221 = vmatpush.bf16.msra.mxu0 %v988
          %1222 = vmatpush.bf16.msra.mxu0 %v986
          %1223 = vmatpush.bf16.msra.mxu0 %v984
          %1224 = vmatpush.bf16.msra.mxu0 %v982
          %1225 = vmatpush.bf16.msra.mxu0 %v980
          %1226 = vmatpush.bf16.msra.mxu0 %v978
          %1227 = vmatpush.bf16.msra.mxu0 %v976
          %1228 = vmatpush.bf16.msra.mxu0 %v974
          %1229 = vmatmul.bf16.gmra.mxu0 %v403
          %v1230 = vpop.f32.mrf.mxu0
          %v1231 = vadd.f32 %v1218, %v1230
          %v1232 = vpop.f32.mrf.mxu0
          %1233 = vdwg.mxu0
          %1234 = vmatpush.bf16.msra.mxu0 %v1004
          %1235 = vmatpush.bf16.msra.mxu0 %v1002
          %1236 = vmatpush.bf16.msra.mxu0 %v1000
          %1237 = vmatpush.bf16.msra.mxu0 %v998
          %1238 = vmatpush.bf16.msra.mxu0 %v996
          %1239 = vmatpush.bf16.msra.mxu0 %v994
          %1240 = vmatpush.bf16.msra.mxu0 %v992
          %1241 = vmatpush.bf16.msra.mxu0 %v990
          %1242 = vmatmul.bf16.gmra.mxu0 %v404
          %v1243 = vpop.f32.mrf.mxu0
          %v1244 = vadd.f32 %v1231, %v1243
          %v1245 = vpop.f32.mrf.mxu0
          %1246 = vdwg.mxu0
          %1247 = vmatpush.bf16.msra.mxu0 %v1020
          %1248 = vmatpush.bf16.msra.mxu0 %v1018
          %1249 = vmatpush.bf16.msra.mxu0 %v1016
          %1250 = vmatpush.bf16.msra.mxu0 %v1014
          %1251 = vmatpush.bf16.msra.mxu0 %v1012
          %1252 = vmatpush.bf16.msra.mxu0 %v1010
          %1253 = vmatpush.bf16.msra.mxu0 %v1008
          %1254 = vmatpush.bf16.msra.mxu0 %v1006
          %1255 = vmatmul.bf16.gmra.mxu0 %v405
          %v1256 = vpop.f32.mrf.mxu0
          %v1257 = vadd.f32 %v1244, %v1256
          %v1258 = vpop.f32.mrf.mxu0
          %1259 = vdwg.mxu0
          %1260 = vmatpush.bf16.msra.mxu0 %v1036
          %1261 = vmatpush.bf16.msra.mxu0 %v1034
          %1262 = vmatpush.bf16.msra.mxu0 %v1032
          %1263 = vmatpush.bf16.msra.mxu0 %v1030
          %1264 = vmatpush.bf16.msra.mxu0 %v1028
          %1265 = vmatpush.bf16.msra.mxu0 %v1026
          %1266 = vmatpush.bf16.msra.mxu0 %v1024
          %1267 = vmatpush.bf16.msra.mxu0 %v1022
          %1268 = vmatmul.bf16.gmra.mxu0 %v406
          %v1269 = vpop.f32.mrf.mxu0
          %v1270 = vadd.f32 %v1257, %v1269
          %v1271 = vpop.f32.mrf.mxu0
          %1272 = vdwg.mxu0
          %1273 = vmatpush.bf16.msra.mxu0 %v1052
          %1274 = vmatpush.bf16.msra.mxu0 %v1050
          %1275 = vmatpush.bf16.msra.mxu0 %v1048
          %1276 = vmatpush.bf16.msra.mxu0 %v1046
          %1277 = vmatpush.bf16.msra.mxu0 %v1044
          %1278 = vmatpush.bf16.msra.mxu0 %v1042
          %1279 = vmatpush.bf16.msra.mxu0 %v1040
          %1280 = vmatpush.bf16.msra.mxu0 %v1038
          %1281 = vmatmul.bf16.gmra.mxu0 %v407
          %v1282 = vpop.f32.mrf.mxu0
          %v1283 = vadd.f32 %v1270, %v1282
          %v1284 = vpop.f32.mrf.mxu0
          %1285 = vdwg.mxu0
          %1286 = vmatpush.bf16.msra.mxu0 %v941
          %1287 = vmatpush.bf16.msra.mxu0 %v939
          %1288 = vmatpush.bf16.msra.mxu0 %v937
          %1289 = vmatpush.bf16.msra.mxu0 %v935
          %1290 = vmatpush.bf16.msra.mxu0 %v933
          %1291 = vmatpush.bf16.msra.mxu0 %v931
          %1292 = vmatpush.bf16.msra.mxu0 %v929
          %1293 = vmatpush.bf16.msra.mxu0 %v927
          %1294 = vmatmul.bf16.gmra.mxu0 %v400
          %v1295 = vpop.f32.mrf.mxu0
          %v1296 = vadd.f32 %v539, %v1295
          %v1297 = vpop.f32.mrf.mxu0
          %1298 = vdwg.mxu0
          %1299 = vmatpush.bf16.msra.mxu0 %v957
          %1300 = vmatpush.bf16.msra.mxu0 %v955
          %1301 = vmatpush.bf16.msra.mxu0 %v953
          %1302 = vmatpush.bf16.msra.mxu0 %v951
          %1303 = vmatpush.bf16.msra.mxu0 %v949
          %1304 = vmatpush.bf16.msra.mxu0 %v947
          %1305 = vmatpush.bf16.msra.mxu0 %v945
          %1306 = vmatpush.bf16.msra.mxu0 %v943
          %1307 = vmatmul.bf16.gmra.mxu0 %v401
          %v1308 = vpop.f32.mrf.mxu0
          %v1309 = vadd.f32 %v1296, %v1308
          %v1310 = vpop.f32.mrf.mxu0
          %1311 = vdwg.mxu0
          %1312 = vmatpush.bf16.msra.mxu0 %v973
          %1313 = vmatpush.bf16.msra.mxu0 %v971
          %1314 = vmatpush.bf16.msra.mxu0 %v969
          %1315 = vmatpush.bf16.msra.mxu0 %v967
          %1316 = vmatpush.bf16.msra.mxu0 %v965
          %1317 = vmatpush.bf16.msra.mxu0 %v963
          %1318 = vmatpush.bf16.msra.mxu0 %v961
          %1319 = vmatpush.bf16.msra.mxu0 %v959
          %1320 = vmatmul.bf16.gmra.mxu0 %v402
          %v1321 = vpop.f32.mrf.mxu0
          %v1322 = vadd.f32 %v1309, %v1321
          %v1323 = vpop.f32.mrf.mxu0
          %1324 = vdwg.mxu0
          %1325 = vmatpush.bf16.msra.mxu0 %v989
          %1326 = vmatpush.bf16.msra.mxu0 %v987
          %1327 = vmatpush.bf16.msra.mxu0 %v985
          %1328 = vmatpush.bf16.msra.mxu0 %v983
          %1329 = vmatpush.bf16.msra.mxu0 %v981
          %1330 = vmatpush.bf16.msra.mxu0 %v979
          %1331 = vmatpush.bf16.msra.mxu0 %v977
          %1332 = vmatpush.bf16.msra.mxu0 %v975
          %1333 = vmatmul.bf16.gmra.mxu0 %v403
          %v1334 = vpop.f32.mrf.mxu0
          %v1335 = vadd.f32 %v1322, %v1334
          %v1336 = vpop.f32.mrf.mxu0
          %1337 = vdwg.mxu0
          %1338 = vmatpush.bf16.msra.mxu0 %v1005
          %1339 = vmatpush.bf16.msra.mxu0 %v1003
          %1340 = vmatpush.bf16.msra.mxu0 %v1001
          %1341 = vmatpush.bf16.msra.mxu0 %v999
          %1342 = vmatpush.bf16.msra.mxu0 %v997
          %1343 = vmatpush.bf16.msra.mxu0 %v995
          %1344 = vmatpush.bf16.msra.mxu0 %v993
          %1345 = vmatpush.bf16.msra.mxu0 %v991
          %1346 = vmatmul.bf16.gmra.mxu0 %v404
          %v1347 = vpop.f32.mrf.mxu0
          %v1348 = vadd.f32 %v1335, %v1347
          %v1349 = vpop.f32.mrf.mxu0
          %1350 = vdwg.mxu0
          %1351 = vmatpush.bf16.msra.mxu0 %v1021
          %1352 = vmatpush.bf16.msra.mxu0 %v1019
          %1353 = vmatpush.bf16.msra.mxu0 %v1017
          %1354 = vmatpush.bf16.msra.mxu0 %v1015
          %1355 = vmatpush.bf16.msra.mxu0 %v1013
          %1356 = vmatpush.bf16.msra.mxu0 %v1011
          %1357 = vmatpush.bf16.msra.mxu0 %v1009
          %1358 = vmatpush.bf16.msra.mxu0 %v1007
          %1359 = vmatmul.bf16.gmra.mxu0 %v405
          %v1360 = vpop.f32.mrf.mxu0
          %v1361 = vadd.f32 %v1348, %v1360
          %v1362 = vpop.f32.mrf.mxu0
          %1363 = vdwg.mxu0
          %1364 = vmatpush.bf16.msra.mxu0 %v1037
          %1365 = vmatpush.bf16.msra.mxu0 %v1035
          %1366 = vmatpush.bf16.msra.mxu0 %v1033
          %1367 = vmatpush.bf16.msra.mxu0 %v1031
          %1368 = vmatpush.bf16.msra.mxu0 %v1029
          %1369 = vmatpush.bf16.msra.mxu0 %v1027
          %1370 = vmatpush.bf16.msra.mxu0 %v1025
          %1371 = vmatpush.bf16.msra.mxu0 %v1023
          %1372 = vmatmul.bf16.gmra.mxu0 %v406
          %v1373 = vpop.f32.mrf.mxu0
          %v1374 = vadd.f32 %v1361, %v1373
          %v1375 = vpop.f32.mrf.mxu0
          %1376 = vdwg.mxu0
          %1377 = vmatpush.bf16.msra.mxu0 %v1053
          %1378 = vmatpush.bf16.msra.mxu0 %v1051
          %1379 = vmatpush.bf16.msra.mxu0 %v1049
          %1380 = vmatpush.bf16.msra.mxu0 %v1047
          %1381 = vmatpush.bf16.msra.mxu0 %v1045
          %1382 = vmatpush.bf16.msra.mxu0 %v1043
          %1383 = vmatpush.bf16.msra.mxu0 %v1041
          %1384 = vmatpush.bf16.msra.mxu0 %v1039
          %1385 = vmatmul.bf16.gmra.mxu0 %v407
          %v1386 = vpop.f32.mrf.mxu0
          %v1387 = vadd.f32 %v1374, %v1386
          %v1388 = vpop.f32.mrf.mxu0
          %1389 = vdwg.mxu0
          %1390 = vst [vmem:[#allocation2] sm:$0xff] %v1283
          %1391 = vst [vmem:[#allocation2 + $0x8] sm:$0xff] %v1387
        $region64: #{tpu_custom_call.1} parent=39 // pred_fallthru
          _
        %v1392 = vld [vmem:[#allocation2] sm:$0xff]
        %v1393 = vld [vmem:[#allocation2 + $0x8] sm:$0xff]
        %v1394 = vpack.c.bf16 %v1392, %v1392
        %v1395 = vpack.c.bf16 %v1393, %v1393
        %v1396 = vld [vmem:[%s286] sm:$0xff]
        %v1397 = vld [vmem:[%s286 + $0x8] sm:$0xff]
        %v1398 = vld [vmem:[%s286 + $0x10] sm:$0xff]
        %v1399 = vld [vmem:[%s286 + $0x18] sm:$0xff]
        %v1400 = vld [vmem:[%s286 + $0x20] sm:$0xff]
        %v1401 = vld [vmem:[%s286 + $0x28] sm:$0xff]
        %v1402 = vld [vmem:[%s286 + $0x30] sm:$0xff]
        %v1403 = vld [vmem:[%s286 + $0x38] sm:$0xff]
        %v1404 = vld [vmem:[%s286 + $0x40] sm:$0xff]
        %v1405 = vld [vmem:[%s286 + $0x48] sm:$0xff]
        %v1406 = vld [vmem:[%s286 + $0x50] sm:$0xff]
        %v1407 = vld [vmem:[%s286 + $0x58] sm:$0xff]
        %v1408 = vld [vmem:[%s286 + $0x60] sm:$0xff]
        %v1409 = vld [vmem:[%s286 + $0x68] sm:$0xff]
        %v1410 = vld [vmem:[%s286 + $0x70] sm:$0xff]
        %v1411 = vld [vmem:[%s286 + $0x78] sm:$0xff]
        %v1412 = vld [vmem:[%s286 + $0x80] sm:$0xff]
        %v1413 = vld [vmem:[%s286 + $0x88] sm:$0xff]
        %v1414 = vld [vmem:[%s286 + $0x90] sm:$0xff]
        %v1415 = vld [vmem:[%s286 + $0x98] sm:$0xff]
        %v1416 = vld [vmem:[%s286 + $0xa0] sm:$0xff]
        %v1417 = vld [vmem:[%s286 + $0xa8] sm:$0xff]
        %v1418 = vld [vmem:[%s286 + $0xb0] sm:$0xff]
        %v1419 = vld [vmem:[%s286 + $0xb8] sm:$0xff]
        %v1420 = vld [vmem:[%s286 + $0xc0] sm:$0xff]
        %v1421 = vld [vmem:[%s286 + $0xc8] sm:$0xff]
        %v1422 = vld [vmem:[%s286 + $0xd0] sm:$0xff]
        %v1423 = vld [vmem:[%s286 + $0xd8] sm:$0xff]
        %v1424 = vld [vmem:[%s286 + $0xe0] sm:$0xff]
        %v1425 = vld [vmem:[%s286 + $0xe8] sm:$0xff]
        %v1426 = vld [vmem:[%s286 + $0xf0] sm:$0xff]
        %v1427 = vld [vmem:[%s286 + $0xf8] sm:$0xff]
        %v1428 = vld [vmem:[%s286 + $0x100] sm:$0xff]
        %v1429 = vld [vmem:[%s286 + $0x108] sm:$0xff]
        %v1430 = vld [vmem:[%s286 + $0x110] sm:$0xff]
        %v1431 = vld [vmem:[%s286 + $0x118] sm:$0xff]
        %v1432 = vld [vmem:[%s286 + $0x120] sm:$0xff]
        %v1433 = vld [vmem:[%s286 + $0x128] sm:$0xff]
        %v1434 = vld [vmem:[%s286 + $0x130] sm:$0xff]
        %v1435 = vld [vmem:[%s286 + $0x138] sm:$0xff]
        %v1436 = vld [vmem:[%s286 + $0x140] sm:$0xff]
        %v1437 = vld [vmem:[%s286 + $0x148] sm:$0xff]
        %v1438 = vld [vmem:[%s286 + $0x150] sm:$0xff]
        %v1439 = vld [vmem:[%s286 + $0x158] sm:$0xff]
        %v1440 = vld [vmem:[%s286 + $0x160] sm:$0xff]
        %v1441 = vld [vmem:[%s286 + $0x168] sm:$0xff]
        %v1442 = vld [vmem:[%s286 + $0x170] sm:$0xff]
        %v1443 = vld [vmem:[%s286 + $0x178] sm:$0xff]
        %v1444 = vld [vmem:[%s286 + $0x180] sm:$0xff]
        %v1445 = vld [vmem:[%s286 + $0x188] sm:$0xff]
        %v1446 = vld [vmem:[%s286 + $0x190] sm:$0xff]
        %v1447 = vld [vmem:[%s286 + $0x198] sm:$0xff]
        %v1448 = vld [vmem:[%s286 + $0x1a0] sm:$0xff]
        %v1449 = vld [vmem:[%s286 + $0x1a8] sm:$0xff]
        %v1450 = vld [vmem:[%s286 + $0x1b0] sm:$0xff]
        %v1451 = vld [vmem:[%s286 + $0x1b8] sm:$0xff]
        %v1452 = vld [vmem:[%s286 + $0x1c0] sm:$0xff]
        %v1453 = vld [vmem:[%s286 + $0x1c8] sm:$0xff]
        %v1454 = vld [vmem:[%s286 + $0x1d0] sm:$0xff]
        %v1455 = vld [vmem:[%s286 + $0x1d8] sm:$0xff]
        %v1456 = vld [vmem:[%s286 + $0x1e0] sm:$0xff]
        %v1457 = vld [vmem:[%s286 + $0x1e8] sm:$0xff]
        %v1458 = vld [vmem:[%s286 + $0x1f0] sm:$0xff]
        %v1459 = vld [vmem:[%s286 + $0x1f8] sm:$0xff]
        %v1460 = vld [vmem:[%s296] sm:$0xf]
        %v1462 = vperm.slane %v1460, 0
        %v1463 = vperm.slane %v1460, 1
        %v1464 = vperm.slane %v1460, 2
        %v1465 = vperm.slane %v1460, 3
        %v1534 = vunpack.c.l.b16 %v1396
        %v1535 = vunpack.c.h.b16 %v1396
        %v1536 = vunpack.c.l.b16 %v1397
        %v1537 = vunpack.c.h.b16 %v1397
        %v1538 = vunpack.c.l.b16 %v1398
        %v1539 = vunpack.c.h.b16 %v1398
        %v1540 = vunpack.c.l.b16 %v1399
        %v1541 = vunpack.c.h.b16 %v1399
        %v1542 = vunpack.c.l.b16 %v1400
        %v1543 = vunpack.c.h.b16 %v1400
        %v1544 = vunpack.c.l.b16 %v1401
        %v1545 = vunpack.c.h.b16 %v1401
        %v1546 = vunpack.c.l.b16 %v1402
        %v1547 = vunpack.c.h.b16 %v1402
        %v1548 = vunpack.c.l.b16 %v1403
        %v1549 = vunpack.c.h.b16 %v1403
        %v1550 = vunpack.c.l.b16 %v1404
        %v1551 = vunpack.c.h.b16 %v1404
        %v1552 = vunpack.c.l.b16 %v1405
        %v1553 = vunpack.c.h.b16 %v1405
        %v1554 = vunpack.c.l.b16 %v1406
        %v1555 = vunpack.c.h.b16 %v1406
        %v1556 = vunpack.c.l.b16 %v1407
        %v1557 = vunpack.c.h.b16 %v1407
        %v1558 = vunpack.c.l.b16 %v1408
        %v1559 = vunpack.c.h.b16 %v1408
        %v1560 = vunpack.c.l.b16 %v1409
        %v1561 = vunpack.c.h.b16 %v1409
        %v1562 = vunpack.c.l.b16 %v1410
        %v1563 = vunpack.c.h.b16 %v1410
        %v1564 = vunpack.c.l.b16 %v1411
        %v1565 = vunpack.c.h.b16 %v1411
        %v1566 = vunpack.c.l.b16 %v1412
        %v1567 = vunpack.c.h.b16 %v1412
        %v1568 = vunpack.c.l.b16 %v1413
        %v1569 = vunpack.c.h.b16 %v1413
        %v1570 = vunpack.c.l.b16 %v1414
        %v1571 = vunpack.c.h.b16 %v1414
        %v1572 = vunpack.c.l.b16 %v1415
        %v1573 = vunpack.c.h.b16 %v1415
        %v1574 = vunpack.c.l.b16 %v1416
        %v1575 = vunpack.c.h.b16 %v1416
        %v1576 = vunpack.c.l.b16 %v1417
        %v1577 = vunpack.c.h.b16 %v1417
        %v1578 = vunpack.c.l.b16 %v1418
        %v1579 = vunpack.c.h.b16 %v1418
        %v1580 = vunpack.c.l.b16 %v1419
        %v1581 = vunpack.c.h.b16 %v1419
        %v1582 = vunpack.c.l.b16 %v1420
        %v1583 = vunpack.c.h.b16 %v1420
        %v1584 = vunpack.c.l.b16 %v1421
        %v1585 = vunpack.c.h.b16 %v1421
        %v1586 = vunpack.c.l.b16 %v1422
        %v1587 = vunpack.c.h.b16 %v1422
        %v1588 = vunpack.c.l.b16 %v1423
        %v1589 = vunpack.c.h.b16 %v1423
        %v1590 = vunpack.c.l.b16 %v1424
        %v1591 = vunpack.c.h.b16 %v1424
        %v1592 = vunpack.c.l.b16 %v1425
        %v1593 = vunpack.c.h.b16 %v1425
        %v1594 = vunpack.c.l.b16 %v1426
        %v1595 = vunpack.c.h.b16 %v1426
        %v1596 = vunpack.c.l.b16 %v1427
        %v1597 = vunpack.c.h.b16 %v1427
        %v1598 = vunpack.c.l.b16 %v1428
        %v1599 = vunpack.c.h.b16 %v1428
        %v1600 = vunpack.c.l.b16 %v1429
        %v1601 = vunpack.c.h.b16 %v1429
        %v1602 = vunpack.c.l.b16 %v1430
        %v1603 = vunpack.c.h.b16 %v1430
        %v1604 = vunpack.c.l.b16 %v1431
        %v1605 = vunpack.c.h.b16 %v1431
        %v1606 = vunpack.c.l.b16 %v1432
        %v1607 = vunpack.c.h.b16 %v1432
        %v1608 = vunpack.c.l.b16 %v1433
        %v1609 = vunpack.c.h.b16 %v1433
        %v1610 = vunpack.c.l.b16 %v1434
        %v1611 = vunpack.c.h.b16 %v1434
        %v1612 = vunpack.c.l.b16 %v1435
        %v1613 = vunpack.c.h.b16 %v1435
        %v1614 = vunpack.c.l.b16 %v1436
        %v1615 = vunpack.c.h.b16 %v1436
        %v1616 = vunpack.c.l.b16 %v1437
        %v1617 = vunpack.c.h.b16 %v1437
        %v1618 = vunpack.c.l.b16 %v1438
        %v1619 = vunpack.c.h.b16 %v1438
        %v1620 = vunpack.c.l.b16 %v1439
        %v1621 = vunpack.c.h.b16 %v1439
        %v1622 = vunpack.c.l.b16 %v1440
        %v1623 = vunpack.c.h.b16 %v1440
        %v1624 = vunpack.c.l.b16 %v1441
        %v1625 = vunpack.c.h.b16 %v1441
        %v1626 = vunpack.c.l.b16 %v1442
        %v1627 = vunpack.c.h.b16 %v1442
        %v1628 = vunpack.c.l.b16 %v1443
        %v1629 = vunpack.c.h.b16 %v1443
        %v1630 = vunpack.c.l.b16 %v1444
        %v1631 = vunpack.c.h.b16 %v1444
        %v1632 = vunpack.c.l.b16 %v1445
        %v1633 = vunpack.c.h.b16 %v1445
        %v1634 = vunpack.c.l.b16 %v1446
        %v1635 = vunpack.c.h.b16 %v1446
        %v1636 = vunpack.c.l.b16 %v1447
        %v1637 = vunpack.c.h.b16 %v1447
        %v1638 = vunpack.c.l.b16 %v1448
        %v1639 = vunpack.c.h.b16 %v1448
        %v1640 = vunpack.c.l.b16 %v1449
        %v1641 = vunpack.c.h.b16 %v1449
        %v1642 = vunpack.c.l.b16 %v1450
        %v1643 = vunpack.c.h.b16 %v1450
        %v1644 = vunpack.c.l.b16 %v1451
        %v1645 = vunpack.c.h.b16 %v1451
        %v1646 = vunpack.c.l.b16 %v1452
        %v1647 = vunpack.c.h.b16 %v1452
        %v1648 = vunpack.c.l.b16 %v1453
        %v1649 = vunpack.c.h.b16 %v1453
        %v1650 = vunpack.c.l.b16 %v1454
        %v1651 = vunpack.c.h.b16 %v1454
        %v1652 = vunpack.c.l.b16 %v1455
        %v1653 = vunpack.c.h.b16 %v1455
        %v1654 = vunpack.c.l.b16 %v1456
        %v1655 = vunpack.c.h.b16 %v1456
        %v1656 = vunpack.c.l.b16 %v1457
        %v1657 = vunpack.c.h.b16 %v1457
        %v1658 = vunpack.c.l.b16 %v1458
        %v1659 = vunpack.c.h.b16 %v1458
        %v1660 = vunpack.c.l.b16 %v1459
        %v1661 = vunpack.c.h.b16 %v1459
        %v1662 = vpack.c.b16 %v1538, %v1534
        %v1663 = vpack.c.b16 %v1539, %v1535
        %v1664 = vpack.c.b16 %v1540, %v1536
        %v1665 = vpack.c.b16 %v1541, %v1537
        %v1666 = vpack.c.b16 %v1546, %v1542
        %v1667 = vpack.c.b16 %v1547, %v1543
        %v1668 = vpack.c.b16 %v1548, %v1544
        %v1669 = vpack.c.b16 %v1549, %v1545
        %v1670 = vpack.c.b16 %v1554, %v1550
        %v1671 = vpack.c.b16 %v1555, %v1551
        %v1672 = vpack.c.b16 %v1556, %v1552
        %v1673 = vpack.c.b16 %v1557, %v1553
        %v1674 = vpack.c.b16 %v1562, %v1558
        %v1675 = vpack.c.b16 %v1563, %v1559
        %v1676 = vpack.c.b16 %v1564, %v1560
        %v1677 = vpack.c.b16 %v1565, %v1561
        %v1678 = vpack.c.b16 %v1570, %v1566
        %v1679 = vpack.c.b16 %v1571, %v1567
        %v1680 = vpack.c.b16 %v1572, %v1568
        %v1681 = vpack.c.b16 %v1573, %v1569
        %v1682 = vpack.c.b16 %v1578, %v1574
        %v1683 = vpack.c.b16 %v1579, %v1575
        %v1684 = vpack.c.b16 %v1580, %v1576
        %v1685 = vpack.c.b16 %v1581, %v1577
        %v1686 = vpack.c.b16 %v1586, %v1582
        %v1687 = vpack.c.b16 %v1587, %v1583
        %v1688 = vpack.c.b16 %v1588, %v1584
        %v1689 = vpack.c.b16 %v1589, %v1585
        %v1690 = vpack.c.b16 %v1594, %v1590
        %v1691 = vpack.c.b16 %v1595, %v1591
        %v1692 = vpack.c.b16 %v1596, %v1592
        %v1693 = vpack.c.b16 %v1597, %v1593
        %v1694 = vpack.c.b16 %v1602, %v1598
        %v1695 = vpack.c.b16 %v1603, %v1599
        %v1696 = vpack.c.b16 %v1604, %v1600
        %v1697 = vpack.c.b16 %v1605, %v1601
        %v1698 = vpack.c.b16 %v1610, %v1606
        %v1699 = vpack.c.b16 %v1611, %v1607
        %v1700 = vpack.c.b16 %v1612, %v1608
        %v1701 = vpack.c.b16 %v1613, %v1609
        %v1702 = vpack.c.b16 %v1618, %v1614
        %v1703 = vpack.c.b16 %v1619, %v1615
        %v1704 = vpack.c.b16 %v1620, %v1616
        %v1705 = vpack.c.b16 %v1621, %v1617
        %v1706 = vpack.c.b16 %v1626, %v1622
        %v1707 = vpack.c.b16 %v1627, %v1623
        %v1708 = vpack.c.b16 %v1628, %v1624
        %v1709 = vpack.c.b16 %v1629, %v1625
        %v1710 = vpack.c.b16 %v1634, %v1630
        %v1711 = vpack.c.b16 %v1635, %v1631
        %v1712 = vpack.c.b16 %v1636, %v1632
        %v1713 = vpack.c.b16 %v1637, %v1633
        %v1714 = vpack.c.b16 %v1642, %v1638
        %v1715 = vpack.c.b16 %v1643, %v1639
        %v1716 = vpack.c.b16 %v1644, %v1640
        %v1717 = vpack.c.b16 %v1645, %v1641
        %v1718 = vpack.c.b16 %v1650, %v1646
        %v1719 = vpack.c.b16 %v1651, %v1647
        %v1720 = vpack.c.b16 %v1652, %v1648
        %v1721 = vpack.c.b16 %v1653, %v1649
        %v1722 = vpack.c.b16 %v1658, %v1654
        %v1723 = vpack.c.b16 %v1659, %v1655
        %v1724 = vpack.c.b16 %v1660, %v1656
        %v1725 = vpack.c.b16 %v1661, %v1657
        %1790 = vmatpush.bf16.msra.mxu0 %v1690
        %1791 = vmatpush.bf16.msra.mxu0 %v1686
        %1792 = vmatpush.bf16.msra.mxu0 %v1682
        %1793 = vmatpush.bf16.msra.mxu0 %v1678
        %1794 = vmatpush.bf16.msra.mxu0 %v1674
        %1795 = vmatpush.bf16.msra.mxu0 %v1670
        %1796 = vmatpush.bf16.msra.mxu0 %v1666
        %1797 = vmatpush.bf16.msra.mxu0 %v1662
        %1798 = vmatmul.bf16.gmra.mxu0 %v1394
        %v1799 = vpop.f32.mrf.mxu0
        %v1800 = vadd.f32 %v1462, %v1799
        %v1801 = vpop.f32.mrf.mxu0
        %1802 = vdwg.mxu0
        %1803 = vmatpush.bf16.msra.mxu0 %v1722
        %1804 = vmatpush.bf16.msra.mxu0 %v1718
        %1805 = vmatpush.bf16.msra.mxu0 %v1714
        %1806 = vmatpush.bf16.msra.mxu0 %v1710
        %1807 = vmatpush.bf16.msra.mxu0 %v1706
        %1808 = vmatpush.bf16.msra.mxu0 %v1702
        %1809 = vmatpush.bf16.msra.mxu0 %v1698
        %1810 = vmatpush.bf16.msra.mxu0 %v1694
        %1811 = vmatmul.bf16.gmra.mxu0 %v1395
        %v1812 = vpop.f32.mrf.mxu0
        %v1813 = vadd.f32 %v1800, %v1812
        %v1814 = vpop.f32.mrf.mxu0
        %1815 = vdwg.mxu0
        %1816 = vmatpush.bf16.msra.mxu0 %v1691
        %1817 = vmatpush.bf16.msra.mxu0 %v1687
        %1818 = vmatpush.bf16.msra.mxu0 %v1683
        %1819 = vmatpush.bf16.msra.mxu0 %v1679
        %1820 = vmatpush.bf16.msra.mxu0 %v1675
        %1821 = vmatpush.bf16.msra.mxu0 %v1671
        %1822 = vmatpush.bf16.msra.mxu0 %v1667
        %1823 = vmatpush.bf16.msra.mxu0 %v1663
        %1824 = vmatmul.bf16.gmra.mxu0 %v1394
        %v1825 = vpop.f32.mrf.mxu0
        %v1826 = vadd.f32 %v1463, %v1825
        %v1827 = vpop.f32.mrf.mxu0
        %1828 = vdwg.mxu0
        %1829 = vmatpush.bf16.msra.mxu0 %v1723
        %1830 = vmatpush.bf16.msra.mxu0 %v1719
        %1831 = vmatpush.bf16.msra.mxu0 %v1715
        %1832 = vmatpush.bf16.msra.mxu0 %v1711
        %1833 = vmatpush.bf16.msra.mxu0 %v1707
        %1834 = vmatpush.bf16.msra.mxu0 %v1703
        %1835 = vmatpush.bf16.msra.mxu0 %v1699
        %1836 = vmatpush.bf16.msra.mxu0 %v1695
        %1837 = vmatmul.bf16.gmra.mxu0 %v1395
        %v1838 = vpop.f32.mrf.mxu0
        %v1839 = vadd.f32 %v1826, %v1838
        %v1840 = vpop.f32.mrf.mxu0
        %1841 = vdwg.mxu0
        %1842 = vmatpush.bf16.msra.mxu0 %v1692
        %1843 = vmatpush.bf16.msra.mxu0 %v1688
        %1844 = vmatpush.bf16.msra.mxu0 %v1684
        %1845 = vmatpush.bf16.msra.mxu0 %v1680
        %1846 = vmatpush.bf16.msra.mxu0 %v1676
        %1847 = vmatpush.bf16.msra.mxu0 %v1672
        %1848 = vmatpush.bf16.msra.mxu0 %v1668
        %1849 = vmatpush.bf16.msra.mxu0 %v1664
        %1850 = vmatmul.bf16.gmra.mxu0 %v1394
        %v1851 = vpop.f32.mrf.mxu0
        %v1852 = vadd.f32 %v1464, %v1851
        %v1853 = vpop.f32.mrf.mxu0
        %1854 = vdwg.mxu0
        %1855 = vmatpush.bf16.msra.mxu0 %v1724
        %1856 = vmatpush.bf16.msra.mxu0 %v1720
        %1857 = vmatpush.bf16.msra.mxu0 %v1716
        %1858 = vmatpush.bf16.msra.mxu0 %v1712
        %1859 = vmatpush.bf16.msra.mxu0 %v1708
        %1860 = vmatpush.bf16.msra.mxu0 %v1704
        %1861 = vmatpush.bf16.msra.mxu0 %v1700
        %1862 = vmatpush.bf16.msra.mxu0 %v1696
        %1863 = vmatmul.bf16.gmra.mxu0 %v1395
        %v1864 = vpop.f32.mrf.mxu0
        %v1865 = vadd.f32 %v1852, %v1864
        %v1866 = vpop.f32.mrf.mxu0
        %1867 = vdwg.mxu0
        %1868 = vmatpush.bf16.msra.mxu0 %v1693
        %1869 = vmatpush.bf16.msra.mxu0 %v1689
        %1870 = vmatpush.bf16.msra.mxu0 %v1685
        %1871 = vmatpush.bf16.msra.mxu0 %v1681
        %1872 = vmatpush.bf16.msra.mxu0 %v1677
        %1873 = vmatpush.bf16.msra.mxu0 %v1673
        %1874 = vmatpush.bf16.msra.mxu0 %v1669
        %1875 = vmatpush.bf16.msra.mxu0 %v1665
        %1876 = vmatmul.bf16.gmra.mxu0 %v1394
        %v1877 = vpop.f32.mrf.mxu0
        %v1878 = vadd.f32 %v1465, %v1877
        %v1879 = vpop.f32.mrf.mxu0
        %1880 = vdwg.mxu0
        %1881 = vmatpush.bf16.msra.mxu0 %v1725
        %1882 = vmatpush.bf16.msra.mxu0 %v1721
        %1883 = vmatpush.bf16.msra.mxu0 %v1717
        %1884 = vmatpush.bf16.msra.mxu0 %v1713
        %1885 = vmatpush.bf16.msra.mxu0 %v1709
        %1886 = vmatpush.bf16.msra.mxu0 %v1705
        %1887 = vmatpush.bf16.msra.mxu0 %v1701
        %1888 = vmatpush.bf16.msra.mxu0 %v1697
        %1889 = vmatmul.bf16.gmra.mxu0 %v1395
        %v1890 = vpop.f32.mrf.mxu0
        %v1891 = vadd.f32 %v1878, %v1890
        %v1892 = vpop.f32.mrf.mxu0
        %1893 = vdwg.mxu0
        %1894 = vst [vmem:[%s328] sm:$0xff] %v1813
        %1895 = vst [vmem:[%s328 + $0x8] sm:$0xff] %v1839
        %1896 = vst [vmem:[%s328 + $0x10] sm:$0xff] %v1865
        %1897 = vst [vmem:[%s328 + $0x18] sm:$0xff] %v1891
        %s1898 = sand.u32 %s147, 1
        %s1899 = scalar_lea.sflag [#allocation5], %s1898
        %s1900 = sand.u32 %s147, 1
        %s1901 = smul.addr %s1900, 32
        %s1902 = scalar_lea.vmem [#allocation12], %s1901
        // Predicated region
        $region65: #{tpu_custom_call.1} parent=39 // pred_check
          %p1903 = pneg %p157
        $region66: #{tpu_custom_call.1} parent=39 // pred_check_branch
          %1905 = sbr.rel (%p1903) target = $region68
        $region67: #{tpu_custom_call.1} parent=39 // pred_region
          %s1906 = smul.u32 4, %s24
          %1908 = vsyncadd %s1899, 0
          %s1909 = smul.addr %s1906, 8
          %s1910 = scalar_lea.hbm %s5, %s1909
          %s1912 = sshll.u32 %s1902, 4
          %s1913 = int_to_ptr.vmem [resolvable:$true] %s1912
          %s1914 = sshll.u32 %s1910, 4
          %s1915 = int_to_ptr.hbm [resolvable:$true] %s1914
          %1917 = dma.vmem_to_hbm [thread:$0]  %s1913, 512, %s1915, %s1899
        $region68: #{tpu_custom_call.1} parent=39 // pred_fallthru
          _
      $region40: #{tpu_custom_call.1} parent=5 // pred_fallthru
        _
      %p1918 = scmp.le.s32.totalorder 2, %s19
      // Predicated region
      $region69: #{tpu_custom_call.1} parent=5 // pred_check
        %p1919 = pneg %p1918
      $region70: #{tpu_custom_call.1} parent=5 // pred_check_branch
        %1921 = sbr.rel (%p1919) target = $region72
      $region71: #{tpu_custom_call.1} parent=5 // pred_region
        %s1922 = ssub.s32 %s19, 2
        // Predicated region
        $region73: #{tpu_custom_call.1} parent=71 // pred_check
          %p1923 = pneg %p163
        $region74: #{tpu_custom_call.1} parent=71 // pred_check_branch
          %1925 = sbr.rel (%p1923) target = $region76
        $region75: #{tpu_custom_call.1} parent=71 // pred_region
          %s1926 = sand.u32 %s148, 1
          %s1927 = scalar_lea.sflag [#allocation5], %s1926
          %s1928 = sand.u32 %s148, 1
          %s1929 = smul.addr %s1928, 32
          %s1930 = scalar_lea.vmem [#allocation12], %s1929
          %1932 = dma.done %s1927, 512
        $region76: #{tpu_custom_call.1} parent=71 // pred_fallthru
          _
      $region72: #{tpu_custom_call.1} parent=5 // pred_fallthru
        _
    $region6: #{tpu_custom_call.1} parent=1 // loop_footer
      %s23 = sadd.s32 1, %s19
    $region7: #{tpu_custom_call.1} parent=1 // loop_footer_branch
      %18 = sbr.rel target = $region3
    $region8: #{tpu_custom_call.1} parent=1 // loop_exit
      _
    %1933 = vsyncpa [#allocation4], 1
    %s1934 = scalar_lea.sflag [#allocation4], 1
    %1935 = vsyncpa %s1934, 1
    %1936 = vsyncpa [#allocation7], 1
    %1937 = vsyncpa [#allocation10], 1
    %s1938 = scalar_lea.sflag [#allocation10], 1
    %1939 = vsyncpa %s1938, 1
    %1940 = vsyncpa [#allocation5], 1
    %s1941 = scalar_lea.sflag [#allocation5], 1
    %1942 = vsyncpa %s1941, 1

</llo_original>
